<compile_context>
chip_gen: v7x
topology: tpu7x:2x2x1
jax: 0.10.0
libtpu: 0.0.40
codegen_flags: <defaults>
</compile_context>

<pallas_src>
import jax
import jax.numpy as jnp
from jax.experimental import pallas as pl
from jax.experimental.pallas import tpu as pltpu


def _lstm_predictor_kernel(x_ref, w1i_ref, w1h_ref, b1_ref,
                           w2i_ref, w2h_ref, b2_ref, wl_ref, bl_ref,
                           out_ref, xg_ref):
    T, B, _ = x_ref.shape          # block shapes: (T, Bblk, 1)
    H = w1h_ref.shape[0]

    # Weights are resident in VMEM; load once, outside the time loop.
    w1h = w1h_ref[...]             # (H, 4H)   cell-1 hidden -> gates
    w2i = w2i_ref[...]             # (H, 4H)   cell-2 input (=h1) -> gates
    w2h = w2h_ref[...]             # (H, 4H)   cell-2 hidden -> gates
    b2 = b2_ref[...]               # (1, 4H)

    # Hoist the cell-1 input contraction (K=1 lane-broadcast) and bias off the
    # serial recurrent chain: one vectorized op for the whole sequence.
    xg_ref[...] = x_ref[...] * w1i_ref[...][None] + b1_ref[...][None]

    def activate(gates, c_prev):
        # One full-width sigmoid over all 4H gate lanes.  The g-gate columns of
        # the weights/bias were pre-scaled by 2 at init, so the gate tanh is
        # recovered from the SAME sigmoid: tanh(x) = 2*sigmoid(2x) - 1.
        sig = jax.nn.sigmoid(gates)
        i = sig[:, 0 * H:1 * H]
        f = sig[:, 1 * H:2 * H]
        g = 2.0 * sig[:, 2 * H:3 * H] - 1.0
        o = sig[:, 3 * H:4 * H]
        c_new = f * c_prev + i * g
        h_new = o * jnp.tanh(c_new)
        return h_new, c_new

    def step(t, carry):
        h1, c1, h2, c2 = carry
        # Cell 1: precomputed x-part + hidden matmul on the MXU.
        gates1 = xg_ref[t] + jnp.dot(h1, w1h,
                                     preferred_element_type=jnp.float32)
        h1n, c1n = activate(gates1, c1)
        # Cell 2: two back-to-back MXU dots (no per-step [h1, h2] lane concat).
        gates2 = (jnp.dot(h1n, w2i, preferred_element_type=jnp.float32)
                  + jnp.dot(h2, w2h, preferred_element_type=jnp.float32)
                  + b2)
        h2n, c2n = activate(gates2, c2)
        return h1n, c1n, h2n, c2n

    z = jnp.zeros((B, H), jnp.float32)
    _, _, h2_last, _ = jax.lax.fori_loop(0, T, step, (z, z, z, z),
                                         unroll=min(T, 8))

    # Final Linear(H, 1): VPU multiply + lane reduce, runs once after the loop.
    out_ref[...] = (jnp.sum(h2_last * wl_ref[...], axis=-1, keepdims=True)
                    + bl_ref[...])


@jax.jit
def lstm_predictor_forward(x, params):
    """x: (B, T) float32.  Returns (B, 1) float32 (last-step linear output)."""
    B, T = x.shape
    H = params["k_w1_hh_t"].shape[0]
    # Time-major, one scalar feature per step (matches x.split(1, dim=1)).
    x3 = jnp.transpose(x, (1, 0)).reshape(T, B, 1)

    # Split the (independent) batch rows into two blocks when large enough so
    # the second TensorCore is used on v7x; single block otherwise.
    bblk = B // 2 if (B >= 16 and B % 16 == 0) else B
    nblk = B // bblk
    vmem = pltpu.MemorySpace.VMEM

    grid_spec = pltpu.PrefetchScalarGridSpec(
        num_scalar_prefetch=0,
        grid=(nblk,),
        in_specs=[
            pl.BlockSpec((T, bblk, 1), lambda i: (0, i, 0), memory_space=vmem),
            pl.BlockSpec((1, 4 * H), lambda i: (0, 0), memory_space=vmem),
            pl.BlockSpec((H, 4 * H), lambda i: (0, 0), memory_space=vmem),
            pl.BlockSpec((1, 4 * H), lambda i: (0, 0), memory_space=vmem),
            pl.BlockSpec((H, 4 * H), lambda i: (0, 0), memory_space=vmem),
            pl.BlockSpec((H, 4 * H), lambda i: (0, 0), memory_space=vmem),
            pl.BlockSpec((1, 4 * H), lambda i: (0, 0), memory_space=vmem),
            pl.BlockSpec((1, H), lambda i: (0, 0), memory_space=vmem),
            pl.BlockSpec((1, 1), lambda i: (0, 0), memory_space=vmem),
        ],
        out_specs=pl.BlockSpec((bblk, 1), lambda i: (i, 0), memory_space=vmem),
        scratch_shapes=[pltpu.VMEM((T, bblk, 4 * H), jnp.float32)],
    )

    return pl.pallas_call(
        _lstm_predictor_kernel,
        out_shape=jax.ShapeDtypeStruct((B, 1), jnp.float32),
        grid_spec=grid_spec,
        compiler_params=pltpu.CompilerParams(
            dimension_semantics=("parallel",)),
    )(x3,
      params["k_w1_ih_t"], params["k_w1_hh_t"], params["k_b1"],
      params["k_w2_ih_t"], params["k_w2_hh_t"], params["k_b2"],
      params["wl_row"], params["bl"])


def init_params(key, n_hidden):
    """Deterministic init mimicking PyTorch's uniform(-1/sqrt(H), 1/sqrt(H)).

    Produces both plain (reference) parameters and kernel parameters whose
    g-gate columns are pre-scaled by 2 (PyTorch gate order i, f, g, o).
    """
    H = n_hidden
    k = 1.0 / jnp.sqrt(jnp.float32(H))
    keys = jax.random.split(key, 10)
    u = lambda kk, shape: jax.random.uniform(kk, shape, jnp.float32, -k, k)

    # LSTMCell 1: input size 1
    w1_ih = u(keys[0], (4 * H, 1))
    w1_hh = u(keys[1], (4 * H, H))
    b1_ih = u(keys[2], (4 * H,))
    b1_hh = u(keys[3], (4 * H,))
    # LSTMCell 2: input size H
    w2_ih = u(keys[4], (4 * H, H))
    w2_hh = u(keys[5], (4 * H, H))
    b2_ih = u(keys[6], (4 * H,))
    b2_hh = u(keys[7], (4 * H,))
    # Linear H -> 1
    wl = u(keys[8], (1, H))
    bl = u(keys[9], (1,))

    b1 = (b1_ih + b1_hh).reshape(1, 4 * H)
    b2 = (b2_ih + b2_hh).reshape(1, 4 * H)

    def scale_g(a):  # (..., 4H): multiply the g-gate columns by 2
        return a.at[..., 2 * H:3 * H].multiply(2.0)

    return {
        # Reference (PyTorch-equivalent) parameters.
        "w1_ih_t": w1_ih.T,                        # (1, 4H)
        "w1_hh_t": w1_hh.T,                        # (H, 4H)
        "b1": b1,                                  # (1, 4H)
        "w2_ih_t": w2_ih.T,                        # (H, 4H)
        "w2_hh_t": w2_hh.T,                        # (H, 4H)
        "b2": b2,                                  # (1, 4H)
        "wl_row": wl,                              # (1, H)
        "bl": bl.reshape(1, 1),                    # (1, 1)
        # Kernel parameters (g columns pre-scaled by 2 for tanh-via-sigmoid).
        "k_w1_ih_t": scale_g(w1_ih.T),
        "k_w1_hh_t": scale_g(w1_hh.T),
        "k_b1": scale_g(b1),
        "k_w2_ih_t": scale_g(w2_ih.T),
        "k_w2_hh_t": scale_g(w2_hh.T),
        "k_b2": scale_g(b2),
    }


def ref_forward(x, p):
    """Pure-JAX reference of the PyTorch forward (for verification)."""
    B, T = x.shape
    H = p["w1_hh_t"].shape[0]
    h1 = jnp.zeros((B, H), jnp.float32)
    c1 = jnp.zeros((B, H), jnp.float32)
    h2 = jnp.zeros((B, H), jnp.float32)
    c2 = jnp.zeros((B, H), jnp.float32)

    def cell(x_in, wi, wh, b, h, c):
        g = x_in @ wi + h @ wh + b
        i = jax.nn.sigmoid(g[:, 0 * H:1 * H])
        f = jax.nn.sigmoid(g[:, 1 * H:2 * H])
        gg = jnp.tanh(g[:, 2 * H:3 * H])
        o = jax.nn.sigmoid(g[:, 3 * H:4 * H])
        c_new = f * c + i * gg
        return o * jnp.tanh(c_new), c_new

    out = None
    for t in range(T):
        xt = x[:, t:t + 1]
        h1, c1 = cell(xt, p["w1_ih_t"], p["w1_hh_t"], p["b1"], h1, c1)
        h2, c2 = cell(h1, p["w2_ih_t"], p["w2_hh_t"], p["b2"], h2, c2)
        out = h2 @ p["wl_row"].T + p["bl"]
    return out


if __name__ == "__main__":
    B, T, H = 8, 8, 32  # batch, sequence length, n_hidden (4H = 128 lanes)
    key = jax.random.PRNGKey(0)
    kx, kp = jax.random.split(key)

    x = jax.random.normal(kx, (B, T), jnp.float32)
    params = init_params(kp, H)

    out = lstm_predictor_forward(x, params)
    out = jax.block_until_ready(out)

    ref = ref_forward(x, params)
    assert out.shape == (B, 1), out.shape
    assert jnp.allclose(out, ref, atol=1e-4, rtol=1e-4), (out, ref)

    print("KERNEL_OK")
</pallas_src>

<mosaic_0001>
module attributes {stable_mosaic.version = 11 : i64} {
  func.func @_lstm_predictor_kernel(%arg0: i32, %arg1: memref<8x8x1xf32, #tpu.memory_space<vmem>>, %arg2: memref<1x128xf32, #tpu.memory_space<vmem>>, %arg3: memref<32x128xf32, #tpu.memory_space<vmem>>, %arg4: memref<1x128xf32, #tpu.memory_space<vmem>>, %arg5: memref<32x128xf32, #tpu.memory_space<vmem>>, %arg6: memref<32x128xf32, #tpu.memory_space<vmem>>, %arg7: memref<1x128xf32, #tpu.memory_space<vmem>>, %arg8: memref<1x32xf32, #tpu.memory_space<vmem>>, %arg9: memref<1x1xf32, #tpu.memory_space<vmem>>, %arg10: memref<8x1xf32, #tpu.memory_space<vmem>>, %arg11: memref<8x8x128xf32, #tpu.memory_space<vmem>>) attributes {dimension_semantics = [#tpu.dimension_semantics<parallel>], iteration_bounds = array<i64: 1>, scalar_prefetch = 0 : i64, scratch_operands = 1 : i64, tpu.core_type = #tpu.core_type<tc>, window_params = [{transform_indices = @transform_0, window_bounds = array<i64: 8, 8, 1>}, {pipeline_mode = #tpu.pipeline_mode<synchronous>, transform_indices = @transform_1, window_bounds = array<i64: 1, 128>}, {pipeline_mode = #tpu.pipeline_mode<synchronous>, transform_indices = @transform_2, window_bounds = array<i64: 32, 128>}, {pipeline_mode = #tpu.pipeline_mode<synchronous>, transform_indices = @transform_3, window_bounds = array<i64: 1, 128>}, {pipeline_mode = #tpu.pipeline_mode<synchronous>, transform_indices = @transform_4, window_bounds = array<i64: 32, 128>}, {pipeline_mode = #tpu.pipeline_mode<synchronous>, transform_indices = @transform_5, window_bounds = array<i64: 32, 128>}, {pipeline_mode = #tpu.pipeline_mode<synchronous>, transform_indices = @transform_6, window_bounds = array<i64: 1, 128>}, {pipeline_mode = #tpu.pipeline_mode<synchronous>, transform_indices = @transform_7, window_bounds = array<i64: 1, 32>}, {pipeline_mode = #tpu.pipeline_mode<synchronous>, transform_indices = @transform_8, window_bounds = array<i64: 1, 1>}, {transform_indices = @transform_9, window_bounds = array<i64: 8, 1>}]} {
    %c0 = arith.constant 0 : index
    %c0_0 = arith.constant 0 : index
    %0 = vector.load %arg3[%c0, %c0_0] : memref<32x128xf32, #tpu.memory_space<vmem>>, vector<32x128xf32>
    %c0_1 = arith.constant 0 : index
    %c0_2 = arith.constant 0 : index
    %1 = vector.load %arg5[%c0_1, %c0_2] : memref<32x128xf32, #tpu.memory_space<vmem>>, vector<32x128xf32>
    %c0_3 = arith.constant 0 : index
    %c0_4 = arith.constant 0 : index
    %2 = vector.load %arg6[%c0_3, %c0_4] : memref<32x128xf32, #tpu.memory_space<vmem>>, vector<32x128xf32>
    %c0_5 = arith.constant 0 : index
    %c0_6 = arith.constant 0 : index
    %3 = vector.load %arg7[%c0_5, %c0_6] : memref<1x128xf32, #tpu.memory_space<vmem>>, vector<1x128xf32>
    %c0_7 = arith.constant 0 : index
    %c0_8 = arith.constant 0 : index
    %c0_9 = arith.constant 0 : index
    %4 = vector.load %arg1[%c0_7, %c0_8, %c0_9] : memref<8x8x1xf32, #tpu.memory_space<vmem>>, vector<8x8x1xf32>
    %c0_10 = arith.constant 0 : index
    %c0_11 = arith.constant 0 : index
    %5 = vector.load %arg2[%c0_10, %c0_11] : memref<1x128xf32, #tpu.memory_space<vmem>>, vector<1x128xf32>
    %6 = vector.shape_cast %5 : vector<1x128xf32> to vector<1x1x128xf32>
    %7 = vector.broadcast %4 : vector<8x8x1xf32> to vector<8x8x128xf32>
    %8 = vector.broadcast %6 : vector<1x1x128xf32> to vector<8x8x128xf32>
    %9 = arith.mulf %7, %8 : vector<8x8x128xf32>
    %c0_12 = arith.constant 0 : index
    %c0_13 = arith.constant 0 : index
    %10 = vector.load %arg4[%c0_12, %c0_13] : memref<1x128xf32, #tpu.memory_space<vmem>>, vector<1x128xf32>
    %11 = vector.shape_cast %10 : vector<1x128xf32> to vector<1x1x128xf32>
    %12 = vector.broadcast %11 : vector<1x1x128xf32> to vector<8x8x128xf32>
    %13 = arith.addf %9, %12 : vector<8x8x128xf32>
    %c0_14 = arith.constant 0 : index
    %c0_15 = arith.constant 0 : index
    %c0_16 = arith.constant 0 : index
    %14 = vector.load %arg11[%c0_14, %c0_15, %c0_16] : memref<8x8x128xf32, #tpu.memory_space<vmem>>, vector<8x8x128xf32>
    tpu.vector_store %arg11[%c0_14, %c0_15, %c0_16], %13 {strides = array<i32>} : memref<8x8x128xf32, #tpu.memory_space<vmem>>, vector<8x8x128xf32>,
    %cst = arith.constant 0.000000e+00 : f32
    %15 = vector.broadcast %cst : f32 to vector<8x32xf32>
    %c0_i32 = arith.constant 0 : i32
    %16 = arith.index_cast %c0_i32 : i32 to index
    %c0_17 = arith.constant 0 : index
    %c0_18 = arith.constant 0 : index
    %17 = vector.load %arg11[%16, %c0_17, %c0_18] : memref<8x8x128xf32, #tpu.memory_space<vmem>>, vector<1x8x128xf32>
    %18 = vector.shape_cast %17 : vector<1x8x128xf32> to vector<8x128xf32>
    %cst_19 = arith.constant dense<0.000000e+00> : vector<8x128xf32>
    %19 = tpu.matmul %15, %0, %cst_19 {dimension_numbers = #tpu.dot_dimension_numbers<[1], [0], [0], [1], [0, 0, 1, 1], [], []>} : vector<8x32xf32>, vector<32x128xf32>, vector<8x128xf32> -> vector<8x128xf32>
    %20 = arith.addf %18, %19 : vector<8x128xf32>
    %21 = arith.negf %20 : vector<8x128xf32>
    %22 = math.exp %21 : vector<8x128xf32>
    %cst_20 = arith.constant 1.000000e+00 : f32
    %23 = vector.broadcast %cst_20 : f32 to vector<8x128xf32>
    %24 = arith.addf %23, %22 : vector<8x128xf32>
    %25 = arith.divf %23, %24 : vector<8x128xf32>
    %26 = vector.extract_strided_slice %25 {offsets = [0, 0], sizes = [8, 32], strides = [1, 1]} : vector<8x128xf32> to vector<8x32xf32>
    %27 = vector.extract_strided_slice %25 {offsets = [0, 32], sizes = [8, 32], strides = [1, 1]} : vector<8x128xf32> to vector<8x32xf32>
    %28 = vector.extract_strided_slice %25 {offsets = [0, 64], sizes = [8, 32], strides = [1, 1]} : vector<8x128xf32> to vector<8x32xf32>
    %cst_21 = arith.constant 2.000000e+00 : f32
    %29 = vector.broadcast %cst_21 : f32 to vector<8x32xf32>
    %30 = arith.mulf %29, %28 : vector<8x32xf32>
    %cst_22 = arith.constant 1.000000e+00 : f32
    %31 = vector.broadcast %cst_22 : f32 to vector<8x32xf32>
    %32 = arith.subf %30, %31 : vector<8x32xf32>
    %33 = vector.extract_strided_slice %25 {offsets = [0, 96], sizes = [8, 32], strides = [1, 1]} : vector<8x128xf32> to vector<8x32xf32>
    %34 = arith.mulf %27, %15 : vector<8x32xf32>
    %35 = arith.mulf %26, %32 : vector<8x32xf32>
    %36 = arith.addf %34, %35 : vector<8x32xf32>
    %37 = math.tanh %36 : vector<8x32xf32>
    %38 = arith.mulf %33, %37 : vector<8x32xf32>
    %cst_23 = arith.constant dense<0.000000e+00> : vector<8x128xf32>
    %39 = tpu.matmul %38, %1, %cst_23 {dimension_numbers = #tpu.dot_dimension_numbers<[1], [0], [0], [1], [0, 0, 1, 1], [], []>} : vector<8x32xf32>, vector<32x128xf32>, vector<8x128xf32> -> vector<8x128xf32>
    %cst_24 = arith.constant dense<0.000000e+00> : vector<8x128xf32>
    %40 = tpu.matmul %15, %2, %cst_24 {dimension_numbers = #tpu.dot_dimension_numbers<[1], [0], [0], [1], [0, 0, 1, 1], [], []>} : vector<8x32xf32>, vector<32x128xf32>, vector<8x128xf32> -> vector<8x128xf32>
    %41 = arith.addf %39, %40 : vector<8x128xf32>
    %42 = vector.broadcast %3 : vector<1x128xf32> to vector<8x128xf32>
    %43 = arith.addf %41, %42 : vector<8x128xf32>
    %44 = arith.negf %43 : vector<8x128xf32>
    %45 = math.exp %44 : vector<8x128xf32>
    %cst_25 = arith.constant 1.000000e+00 : f32
    %46 = vector.broadcast %cst_25 : f32 to vector<8x128xf32>
    %47 = arith.addf %46, %45 : vector<8x128xf32>
    %48 = arith.divf %46, %47 : vector<8x128xf32>
    %49 = vector.extract_strided_slice %48 {offsets = [0, 0], sizes = [8, 32], strides = [1, 1]} : vector<8x128xf32> to vector<8x32xf32>
    %50 = vector.extract_strided_slice %48 {offsets = [0, 32], sizes = [8, 32], strides = [1, 1]} : vector<8x128xf32> to vector<8x32xf32>
    %51 = vector.extract_strided_slice %48 {offsets = [0, 64], sizes = [8, 32], strides = [1, 1]} : vector<8x128xf32> to vector<8x32xf32>
    %cst_26 = arith.constant 2.000000e+00 : f32
    %52 = vector.broadcast %cst_26 : f32 to vector<8x32xf32>
    %53 = arith.mulf %52, %51 : vector<8x32xf32>
    %cst_27 = arith.constant 1.000000e+00 : f32
    %54 = vector.broadcast %cst_27 : f32 to vector<8x32xf32>
    %55 = arith.subf %53, %54 : vector<8x32xf32>
    %56 = vector.extract_strided_slice %48 {offsets = [0, 96], sizes = [8, 32], strides = [1, 1]} : vector<8x128xf32> to vector<8x32xf32>
    %57 = arith.mulf %50, %15 : vector<8x32xf32>
    %58 = arith.mulf %49, %55 : vector<8x32xf32>
    %59 = arith.addf %57, %58 : vector<8x32xf32>
    %60 = math.tanh %59 : vector<8x32xf32>
    %61 = arith.mulf %56, %60 : vector<8x32xf32>
    %c1_i32 = arith.constant 1 : i32
    %62 = arith.index_cast %c1_i32 : i32 to index
    %c0_28 = arith.constant 0 : index
    %c0_29 = arith.constant 0 : index
    %63 = vector.load %arg11[%62, %c0_28, %c0_29] : memref<8x8x128xf32, #tpu.memory_space<vmem>>, vector<1x8x128xf32>
    %64 = vector.shape_cast %63 : vector<1x8x128xf32> to vector<8x128xf32>
    %cst_30 = arith.constant dense<0.000000e+00> : vector<8x128xf32>
    %65 = tpu.matmul %38, %0, %cst_30 {dimension_numbers = #tpu.dot_dimension_numbers<[1], [0], [0], [1], [0, 0, 1, 1], [], []>} : vector<8x32xf32>, vector<32x128xf32>, vector<8x128xf32> -> vector<8x128xf32>
    %66 = arith.addf %64, %65 : vector<8x128xf32>
    %67 = arith.negf %66 : vector<8x128xf32>
    %68 = math.exp %67 : vector<8x128xf32>
    %cst_31 = arith.constant 1.000000e+00 : f32
    %69 = vector.broadcast %cst_31 : f32 to vector<8x128xf32>
    %70 = arith.addf %69, %68 : vector<8x128xf32>
    %71 = arith.divf %69, %70 : vector<8x128xf32>
    %72 = vector.extract_strided_slice %71 {offsets = [0, 0], sizes = [8, 32], strides = [1, 1]} : vector<8x128xf32> to vector<8x32xf32>
    %73 = vector.extract_strided_slice %71 {offsets = [0, 32], sizes = [8, 32], strides = [1, 1]} : vector<8x128xf32> to vector<8x32xf32>
    %74 = vector.extract_strided_slice %71 {offsets = [0, 64], sizes = [8, 32], strides = [1, 1]} : vector<8x128xf32> to vector<8x32xf32>
    %cst_32 = arith.constant 2.000000e+00 : f32
    %75 = vector.broadcast %cst_32 : f32 to vector<8x32xf32>
    %76 = arith.mulf %75, %74 : vector<8x32xf32>
    %cst_33 = arith.constant 1.000000e+00 : f32
    %77 = vector.broadcast %cst_33 : f32 to vector<8x32xf32>
    %78 = arith.subf %76, %77 : vector<8x32xf32>
    %79 = vector.extract_strided_slice %71 {offsets = [0, 96], sizes = [8, 32], strides = [1, 1]} : vector<8x128xf32> to vector<8x32xf32>
    %80 = arith.mulf %73, %36 : vector<8x32xf32>
    %81 = arith.mulf %72, %78 : vector<8x32xf32>
    %82 = arith.addf %80, %81 : vector<8x32xf32>
    %83 = math.tanh %82 : vector<8x32xf32>
    %84 = arith.mulf %79, %83 : vector<8x32xf32>
    %cst_34 = arith.constant dense<0.000000e+00> : vector<8x128xf32>
    %85 = tpu.matmul %84, %1, %cst_34 {dimension_numbers = #tpu.dot_dimension_numbers<[1], [0], [0], [1], [0, 0, 1, 1], [], []>} : vector<8x32xf32>, vector<32x128xf32>, vector<8x128xf32> -> vector<8x128xf32>
    %cst_35 = arith.constant dense<0.000000e+00> : vector<8x128xf32>
    %86 = tpu.matmul %61, %2, %cst_35 {dimension_numbers = #tpu.dot_dimension_numbers<[1], [0], [0], [1], [0, 0, 1, 1], [], []>} : vector<8x32xf32>, vector<32x128xf32>, vector<8x128xf32> -> vector<8x128xf32>
    %87 = arith.addf %85, %86 : vector<8x128xf32>
    %88 = vector.broadcast %3 : vector<1x128xf32> to vector<8x128xf32>
    %89 = arith.addf %87, %88 : vector<8x128xf32>
    %90 = arith.negf %89 : vector<8x128xf32>
    %91 = math.exp %90 : vector<8x128xf32>
    %cst_36 = arith.constant 1.000000e+00 : f32
    %92 = vector.broadcast %cst_36 : f32 to vector<8x128xf32>
    %93 = arith.addf %92, %91 : vector<8x128xf32>
    %94 = arith.divf %92, %93 : vector<8x128xf32>
    %95 = vector.extract_strided_slice %94 {offsets = [0, 0], sizes = [8, 32], strides = [1, 1]} : vector<8x128xf32> to vector<8x32xf32>
    %96 = vector.extract_strided_slice %94 {offsets = [0, 32], sizes = [8, 32], strides = [1, 1]} : vector<8x128xf32> to vector<8x32xf32>
    %97 = vector.extract_strided_slice %94 {offsets = [0, 64], sizes = [8, 32], strides = [1, 1]} : vector<8x128xf32> to vector<8x32xf32>
    %cst_37 = arith.constant 2.000000e+00 : f32
    %98 = vector.broadcast %cst_37 : f32 to vector<8x32xf32>
    %99 = arith.mulf %98, %97 : vector<8x32xf32>
    %cst_38 = arith.constant 1.000000e+00 : f32
    %100 = vector.broadcast %cst_38 : f32 to vector<8x32xf32>
    %101 = arith.subf %99, %100 : vector<8x32xf32>
    %102 = vector.extract_strided_slice %94 {offsets = [0, 96], sizes = [8, 32], strides = [1, 1]} : vector<8x128xf32> to vector<8x32xf32>
    %103 = arith.mulf %96, %59 : vector<8x32xf32>
    %104 = arith.mulf %95, %101 : vector<8x32xf32>
    %105 = arith.addf %103, %104 : vector<8x32xf32>
    %106 = math.tanh %105 : vector<8x32xf32>
    %107 = arith.mulf %102, %106 : vector<8x32xf32>
    %c2_i32 = arith.constant 2 : i32
    %108 = arith.index_cast %c2_i32 : i32 to index
    %c0_39 = arith.constant 0 : index
    %c0_40 = arith.constant 0 : index
    %109 = vector.load %arg11[%108, %c0_39, %c0_40] : memref<8x8x128xf32, #tpu.memory_space<vmem>>, vector<1x8x128xf32>
    %110 = vector.shape_cast %109 : vector<1x8x128xf32> to vector<8x128xf32>
    %cst_41 = arith.constant dense<0.000000e+00> : vector<8x128xf32>
    %111 = tpu.matmul %84, %0, %cst_41 {dimension_numbers = #tpu.dot_dimension_numbers<[1], [0], [0], [1], [0, 0, 1, 1], [], []>} : vector<8x32xf32>, vector<32x128xf32>, vector<8x128xf32> -> vector<8x128xf32>
    %112 = arith.addf %110, %111 : vector<8x128xf32>
    %113 = arith.negf %112 : vector<8x128xf32>
    %114 = math.exp %113 : vector<8x128xf32>
    %cst_42 = arith.constant 1.000000e+00 : f32
    %115 = vector.broadcast %cst_42 : f32 to vector<8x128xf32>
    %116 = arith.addf %115, %114 : vector<8x128xf32>
    %117 = arith.divf %115, %116 : vector<8x128xf32>
    %118 = vector.extract_strided_slice %117 {offsets = [0, 0], sizes = [8, 32], strides = [1, 1]} : vector<8x128xf32> to vector<8x32xf32>
    %119 = vector.extract_strided_slice %117 {offsets = [0, 32], sizes = [8, 32], strides = [1, 1]} : vector<8x128xf32> to vector<8x32xf32>
    %120 = vector.extract_strided_slice %117 {offsets = [0, 64], sizes = [8, 32], strides = [1, 1]} : vector<8x128xf32> to vector<8x32xf32>
    %cst_43 = arith.constant 2.000000e+00 : f32
    %121 = vector.broadcast %cst_43 : f32 to vector<8x32xf32>
    %122 = arith.mulf %121, %120 : vector<8x32xf32>
    %cst_44 = arith.constant 1.000000e+00 : f32
    %123 = vector.broadcast %cst_44 : f32 to vector<8x32xf32>
    %124 = arith.subf %122, %123 : vector<8x32xf32>
    %125 = vector.extract_strided_slice %117 {offsets = [0, 96], sizes = [8, 32], strides = [1, 1]} : vector<8x128xf32> to vector<8x32xf32>
    %126 = arith.mulf %119, %82 : vector<8x32xf32>
    %127 = arith.mulf %118, %124 : vector<8x32xf32>
    %128 = arith.addf %126, %127 : vector<8x32xf32>
    %129 = math.tanh %128 : vector<8x32xf32>
    %130 = arith.mulf %125, %129 : vector<8x32xf32>
    %cst_45 = arith.constant dense<0.000000e+00> : vector<8x128xf32>
    %131 = tpu.matmul %130, %1, %cst_45 {dimension_numbers = #tpu.dot_dimension_numbers<[1], [0], [0], [1], [0, 0, 1, 1], [], []>} : vector<8x32xf32>, vector<32x128xf32>, vector<8x128xf32> -> vector<8x128xf32>
    %cst_46 = arith.constant dense<0.000000e+00> : vector<8x128xf32>
    %132 = tpu.matmul %107, %2, %cst_46 {dimension_numbers = #tpu.dot_dimension_numbers<[1], [0], [0], [1], [0, 0, 1, 1], [], []>} : vector<8x32xf32>, vector<32x128xf32>, vector<8x128xf32> -> vector<8x128xf32>
    %133 = arith.addf %131, %132 : vector<8x128xf32>
    %134 = vector.broadcast %3 : vector<1x128xf32> to vector<8x128xf32>
    %135 = arith.addf %133, %134 : vector<8x128xf32>
    %136 = arith.negf %135 : vector<8x128xf32>
    %137 = math.exp %136 : vector<8x128xf32>
    %cst_47 = arith.constant 1.000000e+00 : f32
    %138 = vector.broadcast %cst_47 : f32 to vector<8x128xf32>
    %139 = arith.addf %138, %137 : vector<8x128xf32>
    %140 = arith.divf %138, %139 : vector<8x128xf32>
    %141 = vector.extract_strided_slice %140 {offsets = [0, 0], sizes = [8, 32], strides = [1, 1]} : vector<8x128xf32> to vector<8x32xf32>
    %142 = vector.extract_strided_slice %140 {offsets = [0, 32], sizes = [8, 32], strides = [1, 1]} : vector<8x128xf32> to vector<8x32xf32>
    %143 = vector.extract_strided_slice %140 {offsets = [0, 64], sizes = [8, 32], strides = [1, 1]} : vector<8x128xf32> to vector<8x32xf32>
    %cst_48 = arith.constant 2.000000e+00 : f32
    %144 = vector.broadcast %cst_48 : f32 to vector<8x32xf32>
    %145 = arith.mulf %144, %143 : vector<8x32xf32>
    %cst_49 = arith.constant 1.000000e+00 : f32
    %146 = vector.broadcast %cst_49 : f32 to vector<8x32xf32>
    %147 = arith.subf %145, %146 : vector<8x32xf32>
    %148 = vector.extract_strided_slice %140 {offsets = [0, 96], sizes = [8, 32], strides = [1, 1]} : vector<8x128xf32> to vector<8x32xf32>
    %149 = arith.mulf %142, %105 : vector<8x32xf32>
    %150 = arith.mulf %141, %147 : vector<8x32xf32>
    %151 = arith.addf %149, %150 : vector<8x32xf32>
    %152 = math.tanh %151 : vector<8x32xf32>
    %153 = arith.mulf %148, %152 : vector<8x32xf32>
    %c3_i32 = arith.constant 3 : i32
    %154 = arith.index_cast %c3_i32 : i32 to index
    %c0_50 = arith.constant 0 : index
    %c0_51 = arith.constant 0 : index
    %155 = vector.load %arg11[%154, %c0_50, %c0_51] : memref<8x8x128xf32, #tpu.memory_space<vmem>>, vector<1x8x128xf32>
    %156 = vector.shape_cast %155 : vector<1x8x128xf32> to vector<8x128xf32>
    %cst_52 = arith.constant dense<0.000000e+00> : vector<8x128xf32>
    %157 = tpu.matmul %130, %0, %cst_52 {dimension_numbers = #tpu.dot_dimension_numbers<[1], [0], [0], [1], [0, 0, 1, 1], [], []>} : vector<8x32xf32>, vector<32x128xf32>, vector<8x128xf32> -> vector<8x128xf32>
    %158 = arith.addf %156, %157 : vector<8x128xf32>
    %159 = arith.negf %158 : vector<8x128xf32>
    %160 = math.exp %159 : vector<8x128xf32>
    %cst_53 = arith.constant 1.000000e+00 : f32
    %161 = vector.broadcast %cst_53 : f32 to vector<8x128xf32>
    %162 = arith.addf %161, %160 : vector<8x128xf32>
    %163 = arith.divf %161, %162 : vector<8x128xf32>
    %164 = vector.extract_strided_slice %163 {offsets = [0, 0], sizes = [8, 32], strides = [1, 1]} : vector<8x128xf32> to vector<8x32xf32>
    %165 = vector.extract_strided_slice %163 {offsets = [0, 32], sizes = [8, 32], strides = [1, 1]} : vector<8x128xf32> to vector<8x32xf32>
    %166 = vector.extract_strided_slice %163 {offsets = [0, 64], sizes = [8, 32], strides = [1, 1]} : vector<8x128xf32> to vector<8x32xf32>
    %cst_54 = arith.constant 2.000000e+00 : f32
    %167 = vector.broadcast %cst_54 : f32 to vector<8x32xf32>
    %168 = arith.mulf %167, %166 : vector<8x32xf32>
    %cst_55 = arith.constant 1.000000e+00 : f32
    %169 = vector.broadcast %cst_55 : f32 to vector<8x32xf32>
    %170 = arith.subf %168, %169 : vector<8x32xf32>
    %171 = vector.extract_strided_slice %163 {offsets = [0, 96], sizes = [8, 32], strides = [1, 1]} : vector<8x128xf32> to vector<8x32xf32>
    %172 = arith.mulf %165, %128 : vector<8x32xf32>
    %173 = arith.mulf %164, %170 : vector<8x32xf32>
    %174 = arith.addf %172, %173 : vector<8x32xf32>
    %175 = math.tanh %174 : vector<8x32xf32>
    %176 = arith.mulf %171, %175 : vector<8x32xf32>
    %cst_56 = arith.constant dense<0.000000e+00> : vector<8x128xf32>
    %177 = tpu.matmul %176, %1, %cst_56 {dimension_numbers = #tpu.dot_dimension_numbers<[1], [0], [0], [1], [0, 0, 1, 1], [], []>} : vector<8x32xf32>, vector<32x128xf32>, vector<8x128xf32> -> vector<8x128xf32>
    %cst_57 = arith.constant dense<0.000000e+00> : vector<8x128xf32>
    %178 = tpu.matmul %153, %2, %cst_57 {dimension_numbers = #tpu.dot_dimension_numbers<[1], [0], [0], [1], [0, 0, 1, 1], [], []>} : vector<8x32xf32>, vector<32x128xf32>, vector<8x128xf32> -> vector<8x128xf32>
    %179 = arith.addf %177, %178 : vector<8x128xf32>
    %180 = vector.broadcast %3 : vector<1x128xf32> to vector<8x128xf32>
    %181 = arith.addf %179, %180 : vector<8x128xf32>
    %182 = arith.negf %181 : vector<8x128xf32>
    %183 = math.exp %182 : vector<8x128xf32>
    %cst_58 = arith.constant 1.000000e+00 : f32
    %184 = vector.broadcast %cst_58 : f32 to vector<8x128xf32>
    %185 = arith.addf %184, %183 : vector<8x128xf32>
    %186 = arith.divf %184, %185 : vector<8x128xf32>
    %187 = vector.extract_strided_slice %186 {offsets = [0, 0], sizes = [8, 32], strides = [1, 1]} : vector<8x128xf32> to vector<8x32xf32>
    %188 = vector.extract_strided_slice %186 {offsets = [0, 32], sizes = [8, 32], strides = [1, 1]} : vector<8x128xf32> to vector<8x32xf32>
    %189 = vector.extract_strided_slice %186 {offsets = [0, 64], sizes = [8, 32], strides = [1, 1]} : vector<8x128xf32> to vector<8x32xf32>
    %cst_59 = arith.constant 2.000000e+00 : f32
    %190 = vector.broadcast %cst_59 : f32 to vector<8x32xf32>
    %191 = arith.mulf %190, %189 : vector<8x32xf32>
    %cst_60 = arith.constant 1.000000e+00 : f32
    %192 = vector.broadcast %cst_60 : f32 to vector<8x32xf32>
    %193 = arith.subf %191, %192 : vector<8x32xf32>
    %194 = vector.extract_strided_slice %186 {offsets = [0, 96], sizes = [8, 32], strides = [1, 1]} : vector<8x128xf32> to vector<8x32xf32>
    %195 = arith.mulf %188, %151 : vector<8x32xf32>
    %196 = arith.mulf %187, %193 : vector<8x32xf32>
    %197 = arith.addf %195, %196 : vector<8x32xf32>
    %198 = math.tanh %197 : vector<8x32xf32>
    %199 = arith.mulf %194, %198 : vector<8x32xf32>
    %c4_i32 = arith.constant 4 : i32
    %200 = arith.index_cast %c4_i32 : i32 to index
    %c0_61 = arith.constant 0 : index
    %c0_62 = arith.constant 0 : index
    %201 = vector.load %arg11[%200, %c0_61, %c0_62] : memref<8x8x128xf32, #tpu.memory_space<vmem>>, vector<1x8x128xf32>
    %202 = vector.shape_cast %201 : vector<1x8x128xf32> to vector<8x128xf32>
    %cst_63 = arith.constant dense<0.000000e+00> : vector<8x128xf32>
    %203 = tpu.matmul %176, %0, %cst_63 {dimension_numbers = #tpu.dot_dimension_numbers<[1], [0], [0], [1], [0, 0, 1, 1], [], []>} : vector<8x32xf32>, vector<32x128xf32>, vector<8x128xf32> -> vector<8x128xf32>
    %204 = arith.addf %202, %203 : vector<8x128xf32>
    %205 = arith.negf %204 : vector<8x128xf32>
    %206 = math.exp %205 : vector<8x128xf32>
    %cst_64 = arith.constant 1.000000e+00 : f32
    %207 = vector.broadcast %cst_64 : f32 to vector<8x128xf32>
    %208 = arith.addf %207, %206 : vector<8x128xf32>
    %209 = arith.divf %207, %208 : vector<8x128xf32>
    %210 = vector.extract_strided_slice %209 {offsets = [0, 0], sizes = [8, 32], strides = [1, 1]} : vector<8x128xf32> to vector<8x32xf32>
    %211 = vector.extract_strided_slice %209 {offsets = [0, 32], sizes = [8, 32], strides = [1, 1]} : vector<8x128xf32> to vector<8x32xf32>
    %212 = vector.extract_strided_slice %209 {offsets = [0, 64], sizes = [8, 32], strides = [1, 1]} : vector<8x128xf32> to vector<8x32xf32>
    %cst_65 = arith.constant 2.000000e+00 : f32
    %213 = vector.broadcast %cst_65 : f32 to vector<8x32xf32>
    %214 = arith.mulf %213, %212 : vector<8x32xf32>
    %cst_66 = arith.constant 1.000000e+00 : f32
    %215 = vector.broadcast %cst_66 : f32 to vector<8x32xf32>
    %216 = arith.subf %214, %215 : vector<8x32xf32>
    %217 = vector.extract_strided_slice %209 {offsets = [0, 96], sizes = [8, 32], strides = [1, 1]} : vector<8x128xf32> to vector<8x32xf32>
    %218 = arith.mulf %211, %174 : vector<8x32xf32>
    %219 = arith.mulf %210, %216 : vector<8x32xf32>
    %220 = arith.addf %218, %219 : vector<8x32xf32>
    %221 = math.tanh %220 : vector<8x32xf32>
    %222 = arith.mulf %217, %221 : vector<8x32xf32>
    %cst_67 = arith.constant dense<0.000000e+00> : vector<8x128xf32>
    %223 = tpu.matmul %222, %1, %cst_67 {dimension_numbers = #tpu.dot_dimension_numbers<[1], [0], [0], [1], [0, 0, 1, 1], [], []>} : vector<8x32xf32>, vector<32x128xf32>, vector<8x128xf32> -> vector<8x128xf32>
    %cst_68 = arith.constant dense<0.000000e+00> : vector<8x128xf32>
    %224 = tpu.matmul %199, %2, %cst_68 {dimension_numbers = #tpu.dot_dimension_numbers<[1], [0], [0], [1], [0, 0, 1, 1], [], []>} : vector<8x32xf32>, vector<32x128xf32>, vector<8x128xf32> -> vector<8x128xf32>
    %225 = arith.addf %223, %224 : vector<8x128xf32>
    %226 = vector.broadcast %3 : vector<1x128xf32> to vector<8x128xf32>
    %227 = arith.addf %225, %226 : vector<8x128xf32>
    %228 = arith.negf %227 : vector<8x128xf32>
    %229 = math.exp %228 : vector<8x128xf32>
    %cst_69 = arith.constant 1.000000e+00 : f32
    %230 = vector.broadcast %cst_69 : f32 to vector<8x128xf32>
    %231 = arith.addf %230, %229 : vector<8x128xf32>
    %232 = arith.divf %230, %231 : vector<8x128xf32>
    %233 = vector.extract_strided_slice %232 {offsets = [0, 0], sizes = [8, 32], strides = [1, 1]} : vector<8x128xf32> to vector<8x32xf32>
    %234 = vector.extract_strided_slice %232 {offsets = [0, 32], sizes = [8, 32], strides = [1, 1]} : vector<8x128xf32> to vector<8x32xf32>
    %235 = vector.extract_strided_slice %232 {offsets = [0, 64], sizes = [8, 32], strides = [1, 1]} : vector<8x128xf32> to vector<8x32xf32>
    %cst_70 = arith.constant 2.000000e+00 : f32
    %236 = vector.broadcast %cst_70 : f32 to vector<8x32xf32>
    %237 = arith.mulf %236, %235 : vector<8x32xf32>
    %cst_71 = arith.constant 1.000000e+00 : f32
    %238 = vector.broadcast %cst_71 : f32 to vector<8x32xf32>
    %239 = arith.subf %237, %238 : vector<8x32xf32>
    %240 = vector.extract_strided_slice %232 {offsets = [0, 96], sizes = [8, 32], strides = [1, 1]} : vector<8x128xf32> to vector<8x32xf32>
    %241 = arith.mulf %234, %197 : vector<8x32xf32>
    %242 = arith.mulf %233, %239 : vector<8x32xf32>
    %243 = arith.addf %241, %242 : vector<8x32xf32>
    %244 = math.tanh %243 : vector<8x32xf32>
    %245 = arith.mulf %240, %244 : vector<8x32xf32>
    %c5_i32 = arith.constant 5 : i32
    %246 = arith.index_cast %c5_i32 : i32 to index
    %c0_72 = arith.constant 0 : index
    %c0_73 = arith.constant 0 : index
    %247 = vector.load %arg11[%246, %c0_72, %c0_73] : memref<8x8x128xf32, #tpu.memory_space<vmem>>, vector<1x8x128xf32>
    %248 = vector.shape_cast %247 : vector<1x8x128xf32> to vector<8x128xf32>
    %cst_74 = arith.constant dense<0.000000e+00> : vector<8x128xf32>
    %249 = tpu.matmul %222, %0, %cst_74 {dimension_numbers = #tpu.dot_dimension_numbers<[1], [0], [0], [1], [0, 0, 1, 1], [], []>} : vector<8x32xf32>, vector<32x128xf32>, vector<8x128xf32> -> vector<8x128xf32>
    %250 = arith.addf %248, %249 : vector<8x128xf32>
    %251 = arith.negf %250 : vector<8x128xf32>
    %252 = math.exp %251 : vector<8x128xf32>
    %cst_75 = arith.constant 1.000000e+00 : f32
    %253 = vector.broadcast %cst_75 : f32 to vector<8x128xf32>
    %254 = arith.addf %253, %252 : vector<8x128xf32>
    %255 = arith.divf %253, %254 : vector<8x128xf32>
    %256 = vector.extract_strided_slice %255 {offsets = [0, 0], sizes = [8, 32], strides = [1, 1]} : vector<8x128xf32> to vector<8x32xf32>
    %257 = vector.extract_strided_slice %255 {offsets = [0, 32], sizes = [8, 32], strides = [1, 1]} : vector<8x128xf32> to vector<8x32xf32>
    %258 = vector.extract_strided_slice %255 {offsets = [0, 64], sizes = [8, 32], strides = [1, 1]} : vector<8x128xf32> to vector<8x32xf32>
    %cst_76 = arith.constant 2.000000e+00 : f32
    %259 = vector.broadcast %cst_76 : f32 to vector<8x32xf32>
    %260 = arith.mulf %259, %258 : vector<8x32xf32>
    %cst_77 = arith.constant 1.000000e+00 : f32
    %261 = vector.broadcast %cst_77 : f32 to vector<8x32xf32>
    %262 = arith.subf %260, %261 : vector<8x32xf32>
    %263 = vector.extract_strided_slice %255 {offsets = [0, 96], sizes = [8, 32], strides = [1, 1]} : vector<8x128xf32> to vector<8x32xf32>
    %264 = arith.mulf %257, %220 : vector<8x32xf32>
    %265 = arith.mulf %256, %262 : vector<8x32xf32>
    %266 = arith.addf %264, %265 : vector<8x32xf32>
    %267 = math.tanh %266 : vector<8x32xf32>
    %268 = arith.mulf %263, %267 : vector<8x32xf32>
    %cst_78 = arith.constant dense<0.000000e+00> : vector<8x128xf32>
    %269 = tpu.matmul %268, %1, %cst_78 {dimension_numbers = #tpu.dot_dimension_numbers<[1], [0], [0], [1], [0, 0, 1, 1], [], []>} : vector<8x32xf32>, vector<32x128xf32>, vector<8x128xf32> -> vector<8x128xf32>
    %cst_79 = arith.constant dense<0.000000e+00> : vector<8x128xf32>
    %270 = tpu.matmul %245, %2, %cst_79 {dimension_numbers = #tpu.dot_dimension_numbers<[1], [0], [0], [1], [0, 0, 1, 1], [], []>} : vector<8x32xf32>, vector<32x128xf32>, vector<8x128xf32> -> vector<8x128xf32>
    %271 = arith.addf %269, %270 : vector<8x128xf32>
    %272 = vector.broadcast %3 : vector<1x128xf32> to vector<8x128xf32>
    %273 = arith.addf %271, %272 : vector<8x128xf32>
    %274 = arith.negf %273 : vector<8x128xf32>
    %275 = math.exp %274 : vector<8x128xf32>
    %cst_80 = arith.constant 1.000000e+00 : f32
    %276 = vector.broadcast %cst_80 : f32 to vector<8x128xf32>
    %277 = arith.addf %276, %275 : vector<8x128xf32>
    %278 = arith.divf %276, %277 : vector<8x128xf32>
    %279 = vector.extract_strided_slice %278 {offsets = [0, 0], sizes = [8, 32], strides = [1, 1]} : vector<8x128xf32> to vector<8x32xf32>
    %280 = vector.extract_strided_slice %278 {offsets = [0, 32], sizes = [8, 32], strides = [1, 1]} : vector<8x128xf32> to vector<8x32xf32>
    %281 = vector.extract_strided_slice %278 {offsets = [0, 64], sizes = [8, 32], strides = [1, 1]} : vector<8x128xf32> to vector<8x32xf32>
    %cst_81 = arith.constant 2.000000e+00 : f32
    %282 = vector.broadcast %cst_81 : f32 to vector<8x32xf32>
    %283 = arith.mulf %282, %281 : vector<8x32xf32>
    %cst_82 = arith.constant 1.000000e+00 : f32
    %284 = vector.broadcast %cst_82 : f32 to vector<8x32xf32>
    %285 = arith.subf %283, %284 : vector<8x32xf32>
    %286 = vector.extract_strided_slice %278 {offsets = [0, 96], sizes = [8, 32], strides = [1, 1]} : vector<8x128xf32> to vector<8x32xf32>
    %287 = arith.mulf %280, %243 : vector<8x32xf32>
    %288 = arith.mulf %279, %285 : vector<8x32xf32>
    %289 = arith.addf %287, %288 : vector<8x32xf32>
    %290 = math.tanh %289 : vector<8x32xf32>
    %291 = arith.mulf %286, %290 : vector<8x32xf32>
    %c6_i32 = arith.constant 6 : i32
    %292 = arith.index_cast %c6_i32 : i32 to index
    %c0_83 = arith.constant 0 : index
    %c0_84 = arith.constant 0 : index
    %293 = vector.load %arg11[%292, %c0_83, %c0_84] : memref<8x8x128xf32, #tpu.memory_space<vmem>>, vector<1x8x128xf32>
    %294 = vector.shape_cast %293 : vector<1x8x128xf32> to vector<8x128xf32>
    %cst_85 = arith.constant dense<0.000000e+00> : vector<8x128xf32>
    %295 = tpu.matmul %268, %0, %cst_85 {dimension_numbers = #tpu.dot_dimension_numbers<[1], [0], [0], [1], [0, 0, 1, 1], [], []>} : vector<8x32xf32>, vector<32x128xf32>, vector<8x128xf32> -> vector<8x128xf32>
    %296 = arith.addf %294, %295 : vector<8x128xf32>
    %297 = arith.negf %296 : vector<8x128xf32>
    %298 = math.exp %297 : vector<8x128xf32>
    %cst_86 = arith.constant 1.000000e+00 : f32
    %299 = vector.broadcast %cst_86 : f32 to vector<8x128xf32>
    %300 = arith.addf %299, %298 : vector<8x128xf32>
    %301 = arith.divf %299, %300 : vector<8x128xf32>
    %302 = vector.extract_strided_slice %301 {offsets = [0, 0], sizes = [8, 32], strides = [1, 1]} : vector<8x128xf32> to vector<8x32xf32>
    %303 = vector.extract_strided_slice %301 {offsets = [0, 32], sizes = [8, 32], strides = [1, 1]} : vector<8x128xf32> to vector<8x32xf32>
    %304 = vector.extract_strided_slice %301 {offsets = [0, 64], sizes = [8, 32], strides = [1, 1]} : vector<8x128xf32> to vector<8x32xf32>
    %cst_87 = arith.constant 2.000000e+00 : f32
    %305 = vector.broadcast %cst_87 : f32 to vector<8x32xf32>
    %306 = arith.mulf %305, %304 : vector<8x32xf32>
    %cst_88 = arith.constant 1.000000e+00 : f32
    %307 = vector.broadcast %cst_88 : f32 to vector<8x32xf32>
    %308 = arith.subf %306, %307 : vector<8x32xf32>
    %309 = vector.extract_strided_slice %301 {offsets = [0, 96], sizes = [8, 32], strides = [1, 1]} : vector<8x128xf32> to vector<8x32xf32>
    %310 = arith.mulf %303, %266 : vector<8x32xf32>
    %311 = arith.mulf %302, %308 : vector<8x32xf32>
    %312 = arith.addf %310, %311 : vector<8x32xf32>
    %313 = math.tanh %312 : vector<8x32xf32>
    %314 = arith.mulf %309, %313 : vector<8x32xf32>
    %cst_89 = arith.constant dense<0.000000e+00> : vector<8x128xf32>
    %315 = tpu.matmul %314, %1, %cst_89 {dimension_numbers = #tpu.dot_dimension_numbers<[1], [0], [0], [1], [0, 0, 1, 1], [], []>} : vector<8x32xf32>, vector<32x128xf32>, vector<8x128xf32> -> vector<8x128xf32>
    %cst_90 = arith.constant dense<0.000000e+00> : vector<8x128xf32>
    %316 = tpu.matmul %291, %2, %cst_90 {dimension_numbers = #tpu.dot_dimension_numbers<[1], [0], [0], [1], [0, 0, 1, 1], [], []>} : vector<8x32xf32>, vector<32x128xf32>, vector<8x128xf32> -> vector<8x128xf32>
    %317 = arith.addf %315, %316 : vector<8x128xf32>
    %318 = vector.broadcast %3 : vector<1x128xf32> to vector<8x128xf32>
    %319 = arith.addf %317, %318 : vector<8x128xf32>
    %320 = arith.negf %319 : vector<8x128xf32>
    %321 = math.exp %320 : vector<8x128xf32>
    %cst_91 = arith.constant 1.000000e+00 : f32
    %322 = vector.broadcast %cst_91 : f32 to vector<8x128xf32>
    %323 = arith.addf %322, %321 : vector<8x128xf32>
    %324 = arith.divf %322, %323 : vector<8x128xf32>
    %325 = vector.extract_strided_slice %324 {offsets = [0, 0], sizes = [8, 32], strides = [1, 1]} : vector<8x128xf32> to vector<8x32xf32>
    %326 = vector.extract_strided_slice %324 {offsets = [0, 32], sizes = [8, 32], strides = [1, 1]} : vector<8x128xf32> to vector<8x32xf32>
    %327 = vector.extract_strided_slice %324 {offsets = [0, 64], sizes = [8, 32], strides = [1, 1]} : vector<8x128xf32> to vector<8x32xf32>
    %cst_92 = arith.constant 2.000000e+00 : f32
    %328 = vector.broadcast %cst_92 : f32 to vector<8x32xf32>
    %329 = arith.mulf %328, %327 : vector<8x32xf32>
    %cst_93 = arith.constant 1.000000e+00 : f32
    %330 = vector.broadcast %cst_93 : f32 to vector<8x32xf32>
    %331 = arith.subf %329, %330 : vector<8x32xf32>
    %332 = vector.extract_strided_slice %324 {offsets = [0, 96], sizes = [8, 32], strides = [1, 1]} : vector<8x128xf32> to vector<8x32xf32>
    %333 = arith.mulf %326, %289 : vector<8x32xf32>
    %334 = arith.mulf %325, %331 : vector<8x32xf32>
    %335 = arith.addf %333, %334 : vector<8x32xf32>
    %336 = math.tanh %335 : vector<8x32xf32>
    %337 = arith.mulf %332, %336 : vector<8x32xf32>
    %c7_i32 = arith.constant 7 : i32
    %338 = arith.index_cast %c7_i32 : i32 to index
    %c0_94 = arith.constant 0 : index
    %c0_95 = arith.constant 0 : index
    %339 = vector.load %arg11[%338, %c0_94, %c0_95] : memref<8x8x128xf32, #tpu.memory_space<vmem>>, vector<1x8x128xf32>
    %340 = vector.shape_cast %339 : vector<1x8x128xf32> to vector<8x128xf32>
    %cst_96 = arith.constant dense<0.000000e+00> : vector<8x128xf32>
    %341 = tpu.matmul %314, %0, %cst_96 {dimension_numbers = #tpu.dot_dimension_numbers<[1], [0], [0], [1], [0, 0, 1, 1], [], []>} : vector<8x32xf32>, vector<32x128xf32>, vector<8x128xf32> -> vector<8x128xf32>
    %342 = arith.addf %340, %341 : vector<8x128xf32>
    %343 = arith.negf %342 : vector<8x128xf32>
    %344 = math.exp %343 : vector<8x128xf32>
    %cst_97 = arith.constant 1.000000e+00 : f32
    %345 = vector.broadcast %cst_97 : f32 to vector<8x128xf32>
    %346 = arith.addf %345, %344 : vector<8x128xf32>
    %347 = arith.divf %345, %346 : vector<8x128xf32>
    %348 = vector.extract_strided_slice %347 {offsets = [0, 0], sizes = [8, 32], strides = [1, 1]} : vector<8x128xf32> to vector<8x32xf32>
    %349 = vector.extract_strided_slice %347 {offsets = [0, 32], sizes = [8, 32], strides = [1, 1]} : vector<8x128xf32> to vector<8x32xf32>
    %350 = vector.extract_strided_slice %347 {offsets = [0, 64], sizes = [8, 32], strides = [1, 1]} : vector<8x128xf32> to vector<8x32xf32>
    %cst_98 = arith.constant 2.000000e+00 : f32
    %351 = vector.broadcast %cst_98 : f32 to vector<8x32xf32>
    %352 = arith.mulf %351, %350 : vector<8x32xf32>
    %cst_99 = arith.constant 1.000000e+00 : f32
    %353 = vector.broadcast %cst_99 : f32 to vector<8x32xf32>
    %354 = arith.subf %352, %353 : vector<8x32xf32>
    %355 = vector.extract_strided_slice %347 {offsets = [0, 96], sizes = [8, 32], strides = [1, 1]} : vector<8x128xf32> to vector<8x32xf32>
    %356 = arith.mulf %349, %312 : vector<8x32xf32>
    %357 = arith.mulf %348, %354 : vector<8x32xf32>
    %358 = arith.addf %356, %357 : vector<8x32xf32>
    %359 = math.tanh %358 : vector<8x32xf32>
    %360 = arith.mulf %355, %359 : vector<8x32xf32>
    %cst_100 = arith.constant dense<0.000000e+00> : vector<8x128xf32>
    %361 = tpu.matmul %360, %1, %cst_100 {dimension_numbers = #tpu.dot_dimension_numbers<[1], [0], [0], [1], [0, 0, 1, 1], [], []>} : vector<8x32xf32>, vector<32x128xf32>, vector<8x128xf32> -> vector<8x128xf32>
    %cst_101 = arith.constant dense<0.000000e+00> : vector<8x128xf32>
    %362 = tpu.matmul %337, %2, %cst_101 {dimension_numbers = #tpu.dot_dimension_numbers<[1], [0], [0], [1], [0, 0, 1, 1], [], []>} : vector<8x32xf32>, vector<32x128xf32>, vector<8x128xf32> -> vector<8x128xf32>
    %363 = arith.addf %361, %362 : vector<8x128xf32>
    %364 = vector.broadcast %3 : vector<1x128xf32> to vector<8x128xf32>
    %365 = arith.addf %363, %364 : vector<8x128xf32>
    %366 = arith.negf %365 : vector<8x128xf32>
    %367 = math.exp %366 : vector<8x128xf32>
    %cst_102 = arith.constant 1.000000e+00 : f32
    %368 = vector.broadcast %cst_102 : f32 to vector<8x128xf32>
    %369 = arith.addf %368, %367 : vector<8x128xf32>
    %370 = arith.divf %368, %369 : vector<8x128xf32>
    %371 = vector.extract_strided_slice %370 {offsets = [0, 0], sizes = [8, 32], strides = [1, 1]} : vector<8x128xf32> to vector<8x32xf32>
    %372 = vector.extract_strided_slice %370 {offsets = [0, 32], sizes = [8, 32], strides = [1, 1]} : vector<8x128xf32> to vector<8x32xf32>
    %373 = vector.extract_strided_slice %370 {offsets = [0, 64], sizes = [8, 32], strides = [1, 1]} : vector<8x128xf32> to vector<8x32xf32>
    %cst_103 = arith.constant 2.000000e+00 : f32
    %374 = vector.broadcast %cst_103 : f32 to vector<8x32xf32>
    %375 = arith.mulf %374, %373 : vector<8x32xf32>
    %cst_104 = arith.constant 1.000000e+00 : f32
    %376 = vector.broadcast %cst_104 : f32 to vector<8x32xf32>
    %377 = arith.subf %375, %376 : vector<8x32xf32>
    %378 = vector.extract_strided_slice %370 {offsets = [0, 96], sizes = [8, 32], strides = [1, 1]} : vector<8x128xf32> to vector<8x32xf32>
    %379 = arith.mulf %372, %335 : vector<8x32xf32>
    %380 = arith.mulf %371, %377 : vector<8x32xf32>
    %381 = arith.addf %379, %380 : vector<8x32xf32>
    %382 = math.tanh %381 : vector<8x32xf32>
    %383 = arith.mulf %378, %382 : vector<8x32xf32>
    %c8_i32 = arith.constant 8 : i32
    %c0_105 = arith.constant 0 : index
    %c0_106 = arith.constant 0 : index
    %384 = vector.load %arg8[%c0_105, %c0_106] : memref<1x32xf32, #tpu.memory_space<vmem>>, vector<1x32xf32>
    %385 = vector.broadcast %384 : vector<1x32xf32> to vector<8x32xf32>
    %386 = arith.mulf %383, %385 : vector<8x32xf32>
    %cst_107 = arith.constant dense<0.000000e+00> : vector<8xf32>
    %387 = vector.multi_reduction <add>, %386, %cst_107 [1] : vector<8x32xf32> to vector<8xf32>
    %388 = vector.shape_cast %387 : vector<8xf32> to vector<8x1xf32>
    %c0_108 = arith.constant 0 : index
    %c0_109 = arith.constant 0 : index
    %389 = vector.load %arg9[%c0_108, %c0_109] : memref<1x1xf32, #tpu.memory_space<vmem>>, vector<1x1xf32>
    %390 = vector.broadcast %389 : vector<1x1xf32> to vector<8x1xf32>
    %391 = arith.addf %388, %390 : vector<8x1xf32>
    %c0_110 = arith.constant 0 : index
    %c0_111 = arith.constant 0 : index
    %392 = vector.load %arg10[%c0_110, %c0_111] : memref<8x1xf32, #tpu.memory_space<vmem>>, vector<8x1xf32>
    tpu.vector_store %arg10[%c0_110, %c0_111], %391 {strides = array<i32>} : memref<8x1xf32, #tpu.memory_space<vmem>>, vector<8x1xf32>,
    return
  }
  func.func @transform_0(%arg0: i32) -> (i32, i32, i32) {
    %c0_i32 = arith.constant 0 : i32
    %c0_i32_0 = arith.constant 0 : i32
    %c0_i32_1 = arith.constant 0 : i32
    return %c0_i32, %arg0, %c0_i32_0 : i32, i32, i32
  }
  func.func @transform_1(%arg0: i32) -> (i32, i32) {
    %c0_i32 = arith.constant 0 : i32
    %c0_i32_0 = arith.constant 0 : i32
    %c0_i32_1 = arith.constant 0 : i32
    return %c0_i32, %c0_i32_0 : i32, i32
  }
  func.func @transform_2(%arg0: i32) -> (i32, i32) {
    %c0_i32 = arith.constant 0 : i32
    %c0_i32_0 = arith.constant 0 : i32
    %c0_i32_1 = arith.constant 0 : i32
    return %c0_i32, %c0_i32_0 : i32, i32
  }
  func.func @transform_3(%arg0: i32) -> (i32, i32) {
    %c0_i32 = arith.constant 0 : i32
    %c0_i32_0 = arith.constant 0 : i32
    %c0_i32_1 = arith.constant 0 : i32
    return %c0_i32, %c0_i32_0 : i32, i32
  }
  func.func @transform_4(%arg0: i32) -> (i32, i32) {
    %c0_i32 = arith.constant 0 : i32
    %c0_i32_0 = arith.constant 0 : i32
    %c0_i32_1 = arith.constant 0 : i32
    return %c0_i32, %c0_i32_0 : i32, i32
  }
  func.func @transform_5(%arg0: i32) -> (i32, i32) {
    %c0_i32 = arith.constant 0 : i32
    %c0_i32_0 = arith.constant 0 : i32
    %c0_i32_1 = arith.constant 0 : i32
    return %c0_i32, %c0_i32_0 : i32, i32
  }
  func.func @transform_6(%arg0: i32) -> (i32, i32) {
    %c0_i32 = arith.constant 0 : i32
    %c0_i32_0 = arith.constant 0 : i32
    %c0_i32_1 = arith.constant 0 : i32
    return %c0_i32, %c0_i32_0 : i32, i32
  }
  func.func @transform_7(%arg0: i32) -> (i32, i32) {
    %c0_i32 = arith.constant 0 : i32
    %c0_i32_0 = arith.constant 0 : i32
    %c0_i32_1 = arith.constant 0 : i32
    return %c0_i32, %c0_i32_0 : i32, i32
  }
  func.func @transform_8(%arg0: i32) -> (i32, i32) {
    %c0_i32 = arith.constant 0 : i32
    %c0_i32_0 = arith.constant 0 : i32
    %c0_i32_1 = arith.constant 0 : i32
    return %c0_i32, %c0_i32_0 : i32, i32
  }
  func.func @transform_9(%arg0: i32) -> (i32, i32) {
    %c0_i32 = arith.constant 0 : i32
    %c0_i32_0 = arith.constant 0 : i32
    return %arg0, %c0_i32 : i32, i32
  }
}

</mosaic_0001>

<llo_original>
// kernel: lstm_predictor_forward.1
$region0: #{lstm_predictor_forward.1}
  #allocation0 [shape = 'u32[]', space=smem, size = 0x4, offset = 0x4, fixed_abs, tag = 'smem constant byte address 0x4 - core index']
  #allocation1 [shape = 'u32[144,128]{1,0:T(1,128)}', space=vmem, size = 0x12000, scoped, tag = 'internal scratch']
  #allocation2 [shape = 'f32[8,8,128]{2,1,0:T(8,128)}', space=vmem, size = 0x8000, scoped, tag = 'scratch operand']
  #allocation3 [shape = 'f32[1,1]{1,0:T(1,128)S(1)}', space=vmem, size = 0x200, scoped, tag = 'scoped memory for lstm_predictor_forward.1']
  %s0 = inlined_call_operand.vmem [shape: f32[8,8,1], index: 0, kind: input, shape index: {}]
  %s1 = inlined_call_operand.vmem [shape: f32[1,128], index: 1, kind: input, shape index: {}]
  %s2 = inlined_call_operand.vmem [shape: f32[32,128], index: 2, kind: input, shape index: {}]
  %s3 = inlined_call_operand.vmem [shape: f32[1,128], index: 3, kind: input, shape index: {}]
  %s4 = inlined_call_operand.vmem [shape: f32[32,128], index: 4, kind: input, shape index: {}]
  %s5 = inlined_call_operand.vmem [shape: f32[32,128], index: 5, kind: input, shape index: {}]
  %s6 = inlined_call_operand.vmem [shape: f32[1,128], index: 6, kind: input, shape index: {}]
  %s7 = inlined_call_operand.vmem [shape: f32[1,32], index: 7, kind: input, shape index: {}]
  %s8 = inlined_call_operand.<no memory space> [shape: f32[1,1], index: 8, kind: input, shape index: {}]
  %s9 = inlined_call_operand.vmem [shape: f32[8,1], index: 9, kind: output, shape index: {}]
  %s10 = sld [smem:[#allocation0]]
  $region46: #{lstm_predictor_forward.1} parent=0
    _
  %s12 = ssub.s32 1, %s10
  %s13 = scalar_select 0, %s12, %s10
  %v14 = vstv %s8
  %15 = vst [vmem:[#allocation3] sm:$0x1] %v14
  // Predicated region
  $region2: #{lstm_predictor_forward.1} parent=0 // pred_check
    _
  $region3: #{lstm_predictor_forward.1} parent=0 // pred_check_branch
    %17 = sbr.rel (0) target = $region5
  $region4: #{lstm_predictor_forward.1} parent=0 // pred_region
    _
  $region5: #{lstm_predictor_forward.1} parent=0 // pred_fallthru
    _
  // Predicated region
  $region6: #{lstm_predictor_forward.1} parent=0 // pred_check
    _
  $region7: #{lstm_predictor_forward.1} parent=0 // pred_check_branch
    %19 = sbr.rel (0) target = $region9
  $region8: #{lstm_predictor_forward.1} parent=0 // pred_region
    _
  $region9: #{lstm_predictor_forward.1} parent=0 // pred_fallthru
    _
  // Predicated region
  $region10: #{lstm_predictor_forward.1} parent=0 // pred_check
    _
  $region11: #{lstm_predictor_forward.1} parent=0 // pred_check_branch
    %21 = sbr.rel (0) target = $region13
  $region12: #{lstm_predictor_forward.1} parent=0 // pred_region
    _
  $region13: #{lstm_predictor_forward.1} parent=0 // pred_fallthru
    _
  // Predicated region
  $region14: #{lstm_predictor_forward.1} parent=0 // pred_check
    _
  $region15: #{lstm_predictor_forward.1} parent=0 // pred_check_branch
    %23 = sbr.rel (0) target = $region17
  $region16: #{lstm_predictor_forward.1} parent=0 // pred_region
    _
  $region17: #{lstm_predictor_forward.1} parent=0 // pred_fallthru
    _
  // Predicated region
  $region18: #{lstm_predictor_forward.1} parent=0 // pred_check
    _
  $region19: #{lstm_predictor_forward.1} parent=0 // pred_check_branch
    %25 = sbr.rel (0) target = $region21
  $region20: #{lstm_predictor_forward.1} parent=0 // pred_region
    _
  $region21: #{lstm_predictor_forward.1} parent=0 // pred_fallthru
    _
  // Predicated region
  $region22: #{lstm_predictor_forward.1} parent=0 // pred_check
    _
  $region23: #{lstm_predictor_forward.1} parent=0 // pred_check_branch
    %27 = sbr.rel (0) target = $region25
  $region24: #{lstm_predictor_forward.1} parent=0 // pred_region
    _
  $region25: #{lstm_predictor_forward.1} parent=0 // pred_fallthru
    _
  // Predicated region
  $region26: #{lstm_predictor_forward.1} parent=0 // pred_check
    _
  $region27: #{lstm_predictor_forward.1} parent=0 // pred_check_branch
    %29 = sbr.rel (0) target = $region29
  $region28: #{lstm_predictor_forward.1} parent=0 // pred_region
    _
  $region29: #{lstm_predictor_forward.1} parent=0 // pred_fallthru
    _
  // Predicated region
  $region30: #{lstm_predictor_forward.1} parent=0 // pred_check
    _
  $region31: #{lstm_predictor_forward.1} parent=0 // pred_check_branch
    %31 = sbr.rel (0) target = $region33
  $region32: #{lstm_predictor_forward.1} parent=0 // pred_region
    _
  $region33: #{lstm_predictor_forward.1} parent=0 // pred_fallthru
    _
  // Predicated region
  $region34: #{lstm_predictor_forward.1} parent=0 // pred_check
    _
  $region35: #{lstm_predictor_forward.1} parent=0 // pred_check_branch
    %33 = sbr.rel (0) target = $region37
  $region36: #{lstm_predictor_forward.1} parent=0 // pred_region
    _
  $region37: #{lstm_predictor_forward.1} parent=0 // pred_fallthru
    _
  %v34 = vld [vmem:[%s2] sm:$0xff]
  %v35 = vld [vmem:[%s2 + $0x8] sm:$0xff]
  %v36 = vld [vmem:[%s2 + $0x10] sm:$0xff]
  %v37 = vld [vmem:[%s2 + $0x18] sm:$0xff]
  %v38 = vld [vmem:[%s4] sm:$0xff]
  %v39 = vld [vmem:[%s4 + $0x8] sm:$0xff]
  %v40 = vld [vmem:[%s4 + $0x10] sm:$0xff]
  %v41 = vld [vmem:[%s4 + $0x18] sm:$0xff]
  %v42 = vld [vmem:[%s5] sm:$0xff]
  %v43 = vld [vmem:[%s5 + $0x8] sm:$0xff]
  %v44 = vld [vmem:[%s5 + $0x10] sm:$0xff]
  %v45 = vld [vmem:[%s5 + $0x18] sm:$0xff]
  %v46 = vld [vmem:[%s6] sm:$0x1]
  %v47 = vld [vmem:[%s0] sm:$0xff]
  %v48 = vld [vmem:[%s0 + $0x8] sm:$0xff]
  %v49 = vld [vmem:[%s0 + $0x10] sm:$0xff]
  %v50 = vld [vmem:[%s0 + $0x18] sm:$0xff]
  %v51 = vld [vmem:[%s0 + $0x20] sm:$0xff]
  %v52 = vld [vmem:[%s0 + $0x28] sm:$0xff]
  %v53 = vld [vmem:[%s0 + $0x30] sm:$0xff]
  %v54 = vld [vmem:[%s0 + $0x38] sm:$0xff]
  %v55 = vld [vmem:[%s1] sm:$0x1]
  %57 = vset.pattern.permute.xlu0 0
  %58 = vperm.xlu0 %57, %v47
  %v59 = vpop.permute.xlu0 %58
  %62 = vset.pattern.permute.xlu0 0
  %63 = vperm.xlu0 %62, %v48
  %v64 = vpop.permute.xlu0 %63
  %67 = vset.pattern.permute.xlu0 0
  %68 = vperm.xlu0 %67, %v49
  %v69 = vpop.permute.xlu0 %68
  %72 = vset.pattern.permute.xlu0 0
  %73 = vperm.xlu0 %72, %v50
  %v74 = vpop.permute.xlu0 %73
  %77 = vset.pattern.permute.xlu0 0
  %78 = vperm.xlu0 %77, %v51
  %v79 = vpop.permute.xlu0 %78
  %82 = vset.pattern.permute.xlu0 0
  %83 = vperm.xlu0 %82, %v52
  %v84 = vpop.permute.xlu0 %83
  %87 = vset.pattern.permute.xlu0 0
  %88 = vperm.xlu0 %87, %v53
  %v89 = vpop.permute.xlu0 %88
  %92 = vset.pattern.permute.xlu0 0
  %93 = vperm.xlu0 %92, %v54
  %v94 = vpop.permute.xlu0 %93
  %v97 = vlaneseq
  %v98 = vshrl.u32 %v97, 7
  %v99 = vsub.s32 0, %v98
  %v100 = vrot.slane %v55, %v99
  %v102 = vmul.f32 %v59, %v100
  %v103 = vmul.f32 %v64, %v100
  %v104 = vmul.f32 %v69, %v100
  %v105 = vmul.f32 %v74, %v100
  %v106 = vmul.f32 %v79, %v100
  %v107 = vmul.f32 %v84, %v100
  %v108 = vmul.f32 %v89, %v100
  %v109 = vmul.f32 %v94, %v100
  %v110 = vld [vmem:[%s3] sm:$0x1]
  %v112 = vlaneseq
  %v113 = vshrl.u32 %v112, 7
  %v114 = vsub.s32 0, %v113
  %v115 = vrot.slane %v110, %v114
  %v117 = vadd.f32 %v102, %v115
  %v118 = vadd.f32 %v103, %v115
  %v119 = vadd.f32 %v104, %v115
  %v120 = vadd.f32 %v105, %v115
  %v121 = vadd.f32 %v106, %v115
  %v122 = vadd.f32 %v107, %v115
  %v123 = vadd.f32 %v108, %v115
  %v124 = vadd.f32 %v109, %v115
  %125 = vst [vmem:[#allocation2] sm:$0xff] %v117
  %126 = vst [vmem:[#allocation2 + $0x8] sm:$0xff] %v118
  %127 = vst [vmem:[#allocation2 + $0x10] sm:$0xff] %v119
  %128 = vst [vmem:[#allocation2 + $0x18] sm:$0xff] %v120
  %129 = vst [vmem:[#allocation2 + $0x20] sm:$0xff] %v121
  %130 = vst [vmem:[#allocation2 + $0x28] sm:$0xff] %v122
  %131 = vst [vmem:[#allocation2 + $0x30] sm:$0xff] %v123
  %132 = vst [vmem:[#allocation2 + $0x38] sm:$0xff] %v124
  %v133 = vld [vmem:[#allocation2] sm:$0xff]
  %vm134 = vcmask 261120
  %v136 = vsel %vm134, 0.0, 0
  %138 = vmatprep.subr.mxu0 0.0
  %139 = vmatpush1.msra.mxu0 %v34
  %140 = vmatprep.subr.mxu0 0.0
  %141 = vmatpush1.msra.mxu0 %v35
  %142 = vmatprep.subr.mxu0 0.0
  %143 = vmatpush1.msra.mxu0 %v36
  %144 = vmatprep.subr.mxu0 0.0
  %145 = vmatpush1.msra.mxu0 %v37
  %146 = vmatprep.subr.mxu0 0.0
  %147 = vmatpush1.msra.mxu0 0.0
  %148 = vmatprep.subr.mxu0 0.0
  %149 = vmatpush1.msra.mxu0 0.0
  %150 = vmatprep.subr.mxu0 0.0
  %151 = vmatpush1.msra.mxu0 0.0
  %152 = vmatprep.subr.mxu0 0.0
  %153 = vmatpush1.msra.mxu0 0.0
  %154 = vmatprep.subr.mxu0 0.0
  %155 = vmatpush1.msra.mxu0 0.0
  %156 = vmatprep.subr.mxu0 0.0
  %157 = vmatpush1.msra.mxu0 0.0
  %158 = vmatprep.subr.mxu0 0.0
  %159 = vmatpush1.msra.mxu0 0.0
  %160 = vmatprep.subr.mxu0 0.0
  %161 = vmatpush1.msra.mxu0 0.0
  %162 = vmatprep.subr.mxu0 0.0
  %163 = vmatpush1.msra.mxu0 0.0
  %164 = vmatprep.subr.mxu0 0.0
  %165 = vmatpush1.msra.mxu0 0.0
  %166 = vmatprep.subr.mxu0 0.0
  %167 = vmatpush1.msra.mxu0 0.0
  %168 = vmatprep.subr.mxu0 0.0
  %169 = vmatpush1.msra.mxu0 0.0
  %170 = vmatprep.subr.mxu0 0.0
  %171 = vmatpush1.msra.mxu0 0.0
  %172 = vmatprep.subr.mxu0 0.0
  %173 = vmatpush1.msra.mxu0 0.0
  %174 = vmatprep.subr.mxu0 0.0
  %175 = vmatpush1.msra.mxu0 0.0
  %176 = vmatprep.subr.mxu0 0.0
  %177 = vmatpush1.msra.mxu0 0.0
  %178 = vmatprep.subr.mxu0 0.0
  %179 = vmatpush1.msra.mxu0 0.0
  %180 = vmatprep.subr.mxu0 0.0
  %181 = vmatpush1.msra.mxu0 0.0
  %182 = vmatprep.subr.mxu0 0.0
  %183 = vmatpush1.msra.mxu0 0.0
  %184 = vmatprep.subr.mxu0 0.0
  %185 = vmatpush1.msra.mxu0 0.0
  %186 = vmatprep.subr.mxu0 0.0
  %187 = vmatpush1.msra.mxu0 0.0
  %188 = vmatprep.subr.mxu0 0.0
  %189 = vmatpush1.msra.mxu0 0.0
  %190 = vmatprep.subr.mxu0 0.0
  %191 = vmatpush1.msra.mxu0 0.0
  %192 = vmatprep.subr.mxu0 0.0
  %193 = vmatpush1.msra.mxu0 0.0
  %194 = vmatprep.subr.mxu0 0.0
  %195 = vmatpush1.msra.mxu0 0.0
  %196 = vmatprep.subr.mxu0 0.0
  %197 = vmatpush1.msra.mxu0 0.0
  %198 = vmatprep.subr.mxu0 0.0
  %199 = vmatpush1.msra.mxu0 0.0
  %200 = vmatprep.subr.mxu0 0.0
  %201 = vmatpush1.msra.mxu0 0.0
  %202 = vmatprep.mubr.f32.mxu0 0.0
  %203 = vmatmul.mubr.f32.gmra.mrb[0].mxu0 %v136
  %v204 = vpop.f32.mrb[0].mxu0
  %v205 = vadd.f32 0.0, %v204
  %v206 = vpop.f32.mrb[0].mxu0
  %207 = vdwg.mxu0
  %v208 = vadd.f32 %v133, %v205
  %v209 = vxor.u32 %v208, 2147483648
  %v210 = vmul.f32 %v209, 1.442695
  %v211 = vpow.pop %v210
  %v212 = vadd.f32 %v211, 1.0
  %v213 = vrcp.pop %v212
  %v214 = vmul.f32 1.0, %v213
  %v215 = vmul.f32 %v214, 2.0
  %v216 = vsub.f32 %v215, 1.0
  %v217 = vmul.f32 %v214, 0.0
  %219 = vrot.lane.b32.xlu0 %v216, 64
  %v220 = vpop.permute.xlu0 %219
  %v222 = vmul.f32 %v214, %v220
  %224 = vrot.lane.b32.xlu0 %v222, 32
  %v225 = vpop.permute.xlu0 %224
  %v227 = vadd.f32 %v217, %v225
  %v228 = vtanh.pop %v227
  %230 = vrot.lane.b32.xlu0 %v228, 64
  %v231 = vpop.permute.xlu0 %230
  %v233 = vmul.f32 %v214, %v231
  %234 = vmatprep.subr.mxu0 0.0
  %235 = vmatpush1.msra.mxu0 %v42
  %236 = vmatprep.subr.mxu0 0.0
  %237 = vmatpush1.msra.mxu0 %v43
  %238 = vmatprep.subr.mxu0 0.0
  %239 = vmatpush1.msra.mxu0 %v44
  %240 = vmatprep.subr.mxu0 0.0
  %241 = vmatpush1.msra.mxu0 %v45
  %242 = vmatprep.subr.mxu0 0.0
  %243 = vmatpush1.msra.mxu0 0.0
  %244 = vmatprep.subr.mxu0 0.0
  %245 = vmatpush1.msra.mxu0 0.0
  %246 = vmatprep.subr.mxu0 0.0
  %247 = vmatpush1.msra.mxu0 0.0
  %248 = vmatprep.subr.mxu0 0.0
  %249 = vmatpush1.msra.mxu0 0.0
  %250 = vmatprep.subr.mxu0 0.0
  %251 = vmatpush1.msra.mxu0 0.0
  %252 = vmatprep.subr.mxu0 0.0
  %253 = vmatpush1.msra.mxu0 0.0
  %254 = vmatprep.subr.mxu0 0.0
  %255 = vmatpush1.msra.mxu0 0.0
  %256 = vmatprep.subr.mxu0 0.0
  %257 = vmatpush1.msra.mxu0 0.0
  %258 = vmatprep.subr.mxu0 0.0
  %259 = vmatpush1.msra.mxu0 0.0
  %260 = vmatprep.subr.mxu0 0.0
  %261 = vmatpush1.msra.mxu0 0.0
  %262 = vmatprep.subr.mxu0 0.0
  %263 = vmatpush1.msra.mxu0 0.0
  %264 = vmatprep.subr.mxu0 0.0
  %265 = vmatpush1.msra.mxu0 0.0
  %266 = vmatprep.subr.mxu0 0.0
  %267 = vmatpush1.msra.mxu0 0.0
  %268 = vmatprep.subr.mxu0 0.0
  %269 = vmatpush1.msra.mxu0 0.0
  %270 = vmatprep.subr.mxu0 0.0
  %271 = vmatpush1.msra.mxu0 0.0
  %272 = vmatprep.subr.mxu0 0.0
  %273 = vmatpush1.msra.mxu0 0.0
  %274 = vmatprep.subr.mxu0 0.0
  %275 = vmatpush1.msra.mxu0 0.0
  %276 = vmatprep.subr.mxu0 0.0
  %277 = vmatpush1.msra.mxu0 0.0
  %278 = vmatprep.subr.mxu0 0.0
  %279 = vmatpush1.msra.mxu0 0.0
  %280 = vmatprep.subr.mxu0 0.0
  %281 = vmatpush1.msra.mxu0 0.0
  %282 = vmatprep.subr.mxu0 0.0
  %283 = vmatpush1.msra.mxu0 0.0
  %284 = vmatprep.subr.mxu0 0.0
  %285 = vmatpush1.msra.mxu0 0.0
  %286 = vmatprep.subr.mxu0 0.0
  %287 = vmatpush1.msra.mxu0 0.0
  %288 = vmatprep.subr.mxu0 0.0
  %289 = vmatpush1.msra.mxu0 0.0
  %290 = vmatprep.subr.mxu0 0.0
  %291 = vmatpush1.msra.mxu0 0.0
  %292 = vmatprep.subr.mxu0 0.0
  %293 = vmatpush1.msra.mxu0 0.0
  %294 = vmatprep.subr.mxu0 0.0
  %295 = vmatpush1.msra.mxu0 0.0
  %296 = vmatprep.subr.mxu0 0.0
  %297 = vmatpush1.msra.mxu0 0.0
  %298 = vmatprep.mubr.f32.mxu0 0.0
  %299 = vmatmul.mubr.f32.gmra.mrb[0].mxu0 %v136
  %v300 = vpop.f32.mrb[0].mxu0
  %v301 = vadd.f32 0.0, %v300
  %v302 = vpop.f32.mrb[0].mxu0
  %303 = vdwg.mxu0
  %305 = vrot.lane.b32.xlu0 %v233, 32
  %v306 = vpop.permute.xlu0 %305
  %v307 = vsel %vm134, %v306, 0
  %309 = vmatprep.subr.mxu0 0.0
  %310 = vmatpush1.msra.mxu0 %v38
  %311 = vmatprep.subr.mxu0 0.0
  %312 = vmatpush1.msra.mxu0 %v39
  %313 = vmatprep.subr.mxu0 0.0
  %314 = vmatpush1.msra.mxu0 %v40
  %315 = vmatprep.subr.mxu0 0.0
  %316 = vmatpush1.msra.mxu0 %v41
  %317 = vmatprep.subr.mxu0 0.0
  %318 = vmatpush1.msra.mxu0 0.0
  %319 = vmatprep.subr.mxu0 0.0
  %320 = vmatpush1.msra.mxu0 0.0
  %321 = vmatprep.subr.mxu0 0.0
  %322 = vmatpush1.msra.mxu0 0.0
  %323 = vmatprep.subr.mxu0 0.0
  %324 = vmatpush1.msra.mxu0 0.0
  %325 = vmatprep.subr.mxu0 0.0
  %326 = vmatpush1.msra.mxu0 0.0
  %327 = vmatprep.subr.mxu0 0.0
  %328 = vmatpush1.msra.mxu0 0.0
  %329 = vmatprep.subr.mxu0 0.0
  %330 = vmatpush1.msra.mxu0 0.0
  %331 = vmatprep.subr.mxu0 0.0
  %332 = vmatpush1.msra.mxu0 0.0
  %333 = vmatprep.subr.mxu0 0.0
  %334 = vmatpush1.msra.mxu0 0.0
  %335 = vmatprep.subr.mxu0 0.0
  %336 = vmatpush1.msra.mxu0 0.0
  %337 = vmatprep.subr.mxu0 0.0
  %338 = vmatpush1.msra.mxu0 0.0
  %339 = vmatprep.subr.mxu0 0.0
  %340 = vmatpush1.msra.mxu0 0.0
  %341 = vmatprep.subr.mxu0 0.0
  %342 = vmatpush1.msra.mxu0 0.0
  %343 = vmatprep.subr.mxu0 0.0
  %344 = vmatpush1.msra.mxu0 0.0
  %345 = vmatprep.subr.mxu0 0.0
  %346 = vmatpush1.msra.mxu0 0.0
  %347 = vmatprep.subr.mxu0 0.0
  %348 = vmatpush1.msra.mxu0 0.0
  %349 = vmatprep.subr.mxu0 0.0
  %350 = vmatpush1.msra.mxu0 0.0
  %351 = vmatprep.subr.mxu0 0.0
  %352 = vmatpush1.msra.mxu0 0.0
  %353 = vmatprep.subr.mxu0 0.0
  %354 = vmatpush1.msra.mxu0 0.0
  %355 = vmatprep.subr.mxu0 0.0
  %356 = vmatpush1.msra.mxu0 0.0
  %357 = vmatprep.subr.mxu0 0.0
  %358 = vmatpush1.msra.mxu0 0.0
  %359 = vmatprep.subr.mxu0 0.0
  %360 = vmatpush1.msra.mxu0 0.0
  %361 = vmatprep.subr.mxu0 0.0
  %362 = vmatpush1.msra.mxu0 0.0
  %363 = vmatprep.subr.mxu0 0.0
  %364 = vmatpush1.msra.mxu0 0.0
  %365 = vmatprep.subr.mxu0 0.0
  %366 = vmatpush1.msra.mxu0 0.0
  %367 = vmatprep.subr.mxu0 0.0
  %368 = vmatpush1.msra.mxu0 0.0
  %369 = vmatprep.subr.mxu0 0.0
  %370 = vmatpush1.msra.mxu0 0.0
  %371 = vmatprep.subr.mxu0 0.0
  %372 = vmatpush1.msra.mxu0 0.0
  %373 = vmatprep.mubr.f32.mxu0 0.0
  %374 = vmatmul.mubr.f32.gmra.mrb[0].mxu0 %v307
  %v375 = vpop.f32.mrb[0].mxu0
  %v376 = vadd.f32 %v301, %v375
  %v377 = vpop.f32.mrb[0].mxu0
  %378 = vdwg.mxu0
  %v380 = vlaneseq
  %v381 = vshrl.u32 %v380, 7
  %v382 = vsub.s32 0, %v381
  %v383 = vrot.slane %v46, %v382
  %v385 = vadd.f32 %v376, %v383
  %v386 = vxor.u32 %v385, 2147483648
  %v387 = vmul.f32 %v386, 1.442695
  %v388 = vpow.pop %v387
  %v389 = vadd.f32 %v388, 1.0
  %v390 = vrcp.pop %v389
  %v391 = vmul.f32 1.0, %v390
  %v392 = vmul.f32 %v391, 2.0
  %v393 = vsub.f32 %v392, 1.0
  %v394 = vmul.f32 %v391, 0.0
  %396 = vrot.lane.b32.xlu0 %v393, 64
  %v397 = vpop.permute.xlu0 %396
  %v399 = vmul.f32 %v391, %v397
  %401 = vrot.lane.b32.xlu0 %v399, 32
  %v402 = vpop.permute.xlu0 %401
  %v404 = vadd.f32 %v394, %v402
  %v405 = vtanh.pop %v404
  %407 = vrot.lane.b32.xlu0 %v405, 64
  %v408 = vpop.permute.xlu0 %407
  %v410 = vmul.f32 %v391, %v408
  %s411 = scalar_lea.vmem [#allocation2], 8
  %v412 = vld [vmem:[%s411] sm:$0xff]
  %413 = vmatprep.subr.mxu0 0.0
  %414 = vmatpush1.msra.mxu0 %v34
  %415 = vmatprep.subr.mxu0 0.0
  %416 = vmatpush1.msra.mxu0 %v35
  %417 = vmatprep.subr.mxu0 0.0
  %418 = vmatpush1.msra.mxu0 %v36
  %419 = vmatprep.subr.mxu0 0.0
  %420 = vmatpush1.msra.mxu0 %v37
  %421 = vmatprep.subr.mxu0 0.0
  %422 = vmatpush1.msra.mxu0 0.0
  %423 = vmatprep.subr.mxu0 0.0
  %424 = vmatpush1.msra.mxu0 0.0
  %425 = vmatprep.subr.mxu0 0.0
  %426 = vmatpush1.msra.mxu0 0.0
  %427 = vmatprep.subr.mxu0 0.0
  %428 = vmatpush1.msra.mxu0 0.0
  %429 = vmatprep.subr.mxu0 0.0
  %430 = vmatpush1.msra.mxu0 0.0
  %431 = vmatprep.subr.mxu0 0.0
  %432 = vmatpush1.msra.mxu0 0.0
  %433 = vmatprep.subr.mxu0 0.0
  %434 = vmatpush1.msra.mxu0 0.0
  %435 = vmatprep.subr.mxu0 0.0
  %436 = vmatpush1.msra.mxu0 0.0
  %437 = vmatprep.subr.mxu0 0.0
  %438 = vmatpush1.msra.mxu0 0.0
  %439 = vmatprep.subr.mxu0 0.0
  %440 = vmatpush1.msra.mxu0 0.0
  %441 = vmatprep.subr.mxu0 0.0
  %442 = vmatpush1.msra.mxu0 0.0
  %443 = vmatprep.subr.mxu0 0.0
  %444 = vmatpush1.msra.mxu0 0.0
  %445 = vmatprep.subr.mxu0 0.0
  %446 = vmatpush1.msra.mxu0 0.0
  %447 = vmatprep.subr.mxu0 0.0
  %448 = vmatpush1.msra.mxu0 0.0
  %449 = vmatprep.subr.mxu0 0.0
  %450 = vmatpush1.msra.mxu0 0.0
  %451 = vmatprep.subr.mxu0 0.0
  %452 = vmatpush1.msra.mxu0 0.0
  %453 = vmatprep.subr.mxu0 0.0
  %454 = vmatpush1.msra.mxu0 0.0
  %455 = vmatprep.subr.mxu0 0.0
  %456 = vmatpush1.msra.mxu0 0.0
  %457 = vmatprep.subr.mxu0 0.0
  %458 = vmatpush1.msra.mxu0 0.0
  %459 = vmatprep.subr.mxu0 0.0
  %460 = vmatpush1.msra.mxu0 0.0
  %461 = vmatprep.subr.mxu0 0.0
  %462 = vmatpush1.msra.mxu0 0.0
  %463 = vmatprep.subr.mxu0 0.0
  %464 = vmatpush1.msra.mxu0 0.0
  %465 = vmatprep.subr.mxu0 0.0
  %466 = vmatpush1.msra.mxu0 0.0
  %467 = vmatprep.subr.mxu0 0.0
  %468 = vmatpush1.msra.mxu0 0.0
  %469 = vmatprep.subr.mxu0 0.0
  %470 = vmatpush1.msra.mxu0 0.0
  %471 = vmatprep.subr.mxu0 0.0
  %472 = vmatpush1.msra.mxu0 0.0
  %473 = vmatprep.subr.mxu0 0.0
  %474 = vmatpush1.msra.mxu0 0.0
  %475 = vmatprep.subr.mxu0 0.0
  %476 = vmatpush1.msra.mxu0 0.0
  %477 = vmatprep.mubr.f32.mxu0 0.0
  %478 = vmatmul.mubr.f32.gmra.mrb[0].mxu0 %v307
  %v479 = vpop.f32.mrb[0].mxu0
  %v480 = vadd.f32 0.0, %v479
  %v481 = vpop.f32.mrb[0].mxu0
  %482 = vdwg.mxu0
  %v483 = vadd.f32 %v412, %v480
  %v484 = vxor.u32 %v483, 2147483648
  %v485 = vmul.f32 %v484, 1.442695
  %v486 = vpow.pop %v485
  %v487 = vadd.f32 %v486, 1.0
  %v488 = vrcp.pop %v487
  %v489 = vmul.f32 1.0, %v488
  %v490 = vmul.f32 %v489, 2.0
  %v491 = vsub.f32 %v490, 1.0
  %v492 = vmul.f32 %v489, %v227
  %494 = vrot.lane.b32.xlu0 %v491, 64
  %v495 = vpop.permute.xlu0 %494
  %v497 = vmul.f32 %v489, %v495
  %499 = vrot.lane.b32.xlu0 %v497, 32
  %v500 = vpop.permute.xlu0 %499
  %v502 = vadd.f32 %v492, %v500
  %v503 = vtanh.pop %v502
  %505 = vrot.lane.b32.xlu0 %v503, 64
  %v506 = vpop.permute.xlu0 %505
  %v508 = vmul.f32 %v489, %v506
  %510 = vrot.lane.b32.xlu0 %v410, 32
  %v511 = vpop.permute.xlu0 %510
  %v512 = vsel %vm134, %v511, 0
  %514 = vmatprep.subr.mxu0 0.0
  %515 = vmatpush1.msra.mxu0 %v42
  %516 = vmatprep.subr.mxu0 0.0
  %517 = vmatpush1.msra.mxu0 %v43
  %518 = vmatprep.subr.mxu0 0.0
  %519 = vmatpush1.msra.mxu0 %v44
  %520 = vmatprep.subr.mxu0 0.0
  %521 = vmatpush1.msra.mxu0 %v45
  %522 = vmatprep.subr.mxu0 0.0
  %523 = vmatpush1.msra.mxu0 0.0
  %524 = vmatprep.subr.mxu0 0.0
  %525 = vmatpush1.msra.mxu0 0.0
  %526 = vmatprep.subr.mxu0 0.0
  %527 = vmatpush1.msra.mxu0 0.0
  %528 = vmatprep.subr.mxu0 0.0
  %529 = vmatpush1.msra.mxu0 0.0
  %530 = vmatprep.subr.mxu0 0.0
  %531 = vmatpush1.msra.mxu0 0.0
  %532 = vmatprep.subr.mxu0 0.0
  %533 = vmatpush1.msra.mxu0 0.0
  %534 = vmatprep.subr.mxu0 0.0
  %535 = vmatpush1.msra.mxu0 0.0
  %536 = vmatprep.subr.mxu0 0.0
  %537 = vmatpush1.msra.mxu0 0.0
  %538 = vmatprep.subr.mxu0 0.0
  %539 = vmatpush1.msra.mxu0 0.0
  %540 = vmatprep.subr.mxu0 0.0
  %541 = vmatpush1.msra.mxu0 0.0
  %542 = vmatprep.subr.mxu0 0.0
  %543 = vmatpush1.msra.mxu0 0.0
  %544 = vmatprep.subr.mxu0 0.0
  %545 = vmatpush1.msra.mxu0 0.0
  %546 = vmatprep.subr.mxu0 0.0
  %547 = vmatpush1.msra.mxu0 0.0
  %548 = vmatprep.subr.mxu0 0.0
  %549 = vmatpush1.msra.mxu0 0.0
  %550 = vmatprep.subr.mxu0 0.0
  %551 = vmatpush1.msra.mxu0 0.0
  %552 = vmatprep.subr.mxu0 0.0
  %553 = vmatpush1.msra.mxu0 0.0
  %554 = vmatprep.subr.mxu0 0.0
  %555 = vmatpush1.msra.mxu0 0.0
  %556 = vmatprep.subr.mxu0 0.0
  %557 = vmatpush1.msra.mxu0 0.0
  %558 = vmatprep.subr.mxu0 0.0
  %559 = vmatpush1.msra.mxu0 0.0
  %560 = vmatprep.subr.mxu0 0.0
  %561 = vmatpush1.msra.mxu0 0.0
  %562 = vmatprep.subr.mxu0 0.0
  %563 = vmatpush1.msra.mxu0 0.0
  %564 = vmatprep.subr.mxu0 0.0
  %565 = vmatpush1.msra.mxu0 0.0
  %566 = vmatprep.subr.mxu0 0.0
  %567 = vmatpush1.msra.mxu0 0.0
  %568 = vmatprep.subr.mxu0 0.0
  %569 = vmatpush1.msra.mxu0 0.0
  %570 = vmatprep.subr.mxu0 0.0
  %571 = vmatpush1.msra.mxu0 0.0
  %572 = vmatprep.subr.mxu0 0.0
  %573 = vmatpush1.msra.mxu0 0.0
  %574 = vmatprep.subr.mxu0 0.0
  %575 = vmatpush1.msra.mxu0 0.0
  %576 = vmatprep.subr.mxu0 0.0
  %577 = vmatpush1.msra.mxu0 0.0
  %578 = vmatprep.mubr.f32.mxu0 0.0
  %579 = vmatmul.mubr.f32.gmra.mrb[0].mxu0 %v512
  %v580 = vpop.f32.mrb[0].mxu0
  %v581 = vadd.f32 0.0, %v580
  %v582 = vpop.f32.mrb[0].mxu0
  %583 = vdwg.mxu0
  %585 = vrot.lane.b32.xlu0 %v508, 32
  %v586 = vpop.permute.xlu0 %585
  %v587 = vsel %vm134, %v586, 0
  %589 = vmatprep.subr.mxu0 0.0
  %590 = vmatpush1.msra.mxu0 %v38
  %591 = vmatprep.subr.mxu0 0.0
  %592 = vmatpush1.msra.mxu0 %v39
  %593 = vmatprep.subr.mxu0 0.0
  %594 = vmatpush1.msra.mxu0 %v40
  %595 = vmatprep.subr.mxu0 0.0
  %596 = vmatpush1.msra.mxu0 %v41
  %597 = vmatprep.subr.mxu0 0.0
  %598 = vmatpush1.msra.mxu0 0.0
  %599 = vmatprep.subr.mxu0 0.0
  %600 = vmatpush1.msra.mxu0 0.0
  %601 = vmatprep.subr.mxu0 0.0
  %602 = vmatpush1.msra.mxu0 0.0
  %603 = vmatprep.subr.mxu0 0.0
  %604 = vmatpush1.msra.mxu0 0.0
  %605 = vmatprep.subr.mxu0 0.0
  %606 = vmatpush1.msra.mxu0 0.0
  %607 = vmatprep.subr.mxu0 0.0
  %608 = vmatpush1.msra.mxu0 0.0
  %609 = vmatprep.subr.mxu0 0.0
  %610 = vmatpush1.msra.mxu0 0.0
  %611 = vmatprep.subr.mxu0 0.0
  %612 = vmatpush1.msra.mxu0 0.0
  %613 = vmatprep.subr.mxu0 0.0
  %614 = vmatpush1.msra.mxu0 0.0
  %615 = vmatprep.subr.mxu0 0.0
  %616 = vmatpush1.msra.mxu0 0.0
  %617 = vmatprep.subr.mxu0 0.0
  %618 = vmatpush1.msra.mxu0 0.0
  %619 = vmatprep.subr.mxu0 0.0
  %620 = vmatpush1.msra.mxu0 0.0
  %621 = vmatprep.subr.mxu0 0.0
  %622 = vmatpush1.msra.mxu0 0.0
  %623 = vmatprep.subr.mxu0 0.0
  %624 = vmatpush1.msra.mxu0 0.0
  %625 = vmatprep.subr.mxu0 0.0
  %626 = vmatpush1.msra.mxu0 0.0
  %627 = vmatprep.subr.mxu0 0.0
  %628 = vmatpush1.msra.mxu0 0.0
  %629 = vmatprep.subr.mxu0 0.0
  %630 = vmatpush1.msra.mxu0 0.0
  %631 = vmatprep.subr.mxu0 0.0
  %632 = vmatpush1.msra.mxu0 0.0
  %633 = vmatprep.subr.mxu0 0.0
  %634 = vmatpush1.msra.mxu0 0.0
  %635 = vmatprep.subr.mxu0 0.0
  %636 = vmatpush1.msra.mxu0 0.0
  %637 = vmatprep.subr.mxu0 0.0
  %638 = vmatpush1.msra.mxu0 0.0
  %639 = vmatprep.subr.mxu0 0.0
  %640 = vmatpush1.msra.mxu0 0.0
  %641 = vmatprep.subr.mxu0 0.0
  %642 = vmatpush1.msra.mxu0 0.0
  %643 = vmatprep.subr.mxu0 0.0
  %644 = vmatpush1.msra.mxu0 0.0
  %645 = vmatprep.subr.mxu0 0.0
  %646 = vmatpush1.msra.mxu0 0.0
  %647 = vmatprep.subr.mxu0 0.0
  %648 = vmatpush1.msra.mxu0 0.0
  %649 = vmatprep.subr.mxu0 0.0
  %650 = vmatpush1.msra.mxu0 0.0
  %651 = vmatprep.subr.mxu0 0.0
  %652 = vmatpush1.msra.mxu0 0.0
  %653 = vmatprep.mubr.f32.mxu0 0.0
  %654 = vmatmul.mubr.f32.gmra.mrb[0].mxu0 %v587
  %v655 = vpop.f32.mrb[0].mxu0
  %v656 = vadd.f32 %v581, %v655
  %v657 = vpop.f32.mrb[0].mxu0
  %658 = vdwg.mxu0
  %v659 = vadd.f32 %v656, %v383
  %v660 = vxor.u32 %v659, 2147483648
  %v661 = vmul.f32 %v660, 1.442695
  %v662 = vpow.pop %v661
  %v663 = vadd.f32 %v662, 1.0
  %v664 = vrcp.pop %v663
  %v665 = vmul.f32 1.0, %v664
  %v666 = vmul.f32 %v665, 2.0
  %v667 = vsub.f32 %v666, 1.0
  %v668 = vmul.f32 %v665, %v404
  %670 = vrot.lane.b32.xlu0 %v667, 64
  %v671 = vpop.permute.xlu0 %670
  %v673 = vmul.f32 %v665, %v671
  %675 = vrot.lane.b32.xlu0 %v673, 32
  %v676 = vpop.permute.xlu0 %675
  %v678 = vadd.f32 %v668, %v676
  %v679 = vtanh.pop %v678
  %681 = vrot.lane.b32.xlu0 %v679, 64
  %v682 = vpop.permute.xlu0 %681
  %v684 = vmul.f32 %v665, %v682
  %s685 = scalar_lea.vmem [#allocation2], 16
  %v686 = vld [vmem:[%s685] sm:$0xff]
  %687 = vmatprep.subr.mxu0 0.0
  %688 = vmatpush1.msra.mxu0 %v34
  %689 = vmatprep.subr.mxu0 0.0
  %690 = vmatpush1.msra.mxu0 %v35
  %691 = vmatprep.subr.mxu0 0.0
  %692 = vmatpush1.msra.mxu0 %v36
  %693 = vmatprep.subr.mxu0 0.0
  %694 = vmatpush1.msra.mxu0 %v37
  %695 = vmatprep.subr.mxu0 0.0
  %696 = vmatpush1.msra.mxu0 0.0
  %697 = vmatprep.subr.mxu0 0.0
  %698 = vmatpush1.msra.mxu0 0.0
  %699 = vmatprep.subr.mxu0 0.0
  %700 = vmatpush1.msra.mxu0 0.0
  %701 = vmatprep.subr.mxu0 0.0
  %702 = vmatpush1.msra.mxu0 0.0
  %703 = vmatprep.subr.mxu0 0.0
  %704 = vmatpush1.msra.mxu0 0.0
  %705 = vmatprep.subr.mxu0 0.0
  %706 = vmatpush1.msra.mxu0 0.0
  %707 = vmatprep.subr.mxu0 0.0
  %708 = vmatpush1.msra.mxu0 0.0
  %709 = vmatprep.subr.mxu0 0.0
  %710 = vmatpush1.msra.mxu0 0.0
  %711 = vmatprep.subr.mxu0 0.0
  %712 = vmatpush1.msra.mxu0 0.0
  %713 = vmatprep.subr.mxu0 0.0
  %714 = vmatpush1.msra.mxu0 0.0
  %715 = vmatprep.subr.mxu0 0.0
  %716 = vmatpush1.msra.mxu0 0.0
  %717 = vmatprep.subr.mxu0 0.0
  %718 = vmatpush1.msra.mxu0 0.0
  %719 = vmatprep.subr.mxu0 0.0
  %720 = vmatpush1.msra.mxu0 0.0
  %721 = vmatprep.subr.mxu0 0.0
  %722 = vmatpush1.msra.mxu0 0.0
  %723 = vmatprep.subr.mxu0 0.0
  %724 = vmatpush1.msra.mxu0 0.0
  %725 = vmatprep.subr.mxu0 0.0
  %726 = vmatpush1.msra.mxu0 0.0
  %727 = vmatprep.subr.mxu0 0.0
  %728 = vmatpush1.msra.mxu0 0.0
  %729 = vmatprep.subr.mxu0 0.0
  %730 = vmatpush1.msra.mxu0 0.0
  %731 = vmatprep.subr.mxu0 0.0
  %732 = vmatpush1.msra.mxu0 0.0
  %733 = vmatprep.subr.mxu0 0.0
  %734 = vmatpush1.msra.mxu0 0.0
  %735 = vmatprep.subr.mxu0 0.0
  %736 = vmatpush1.msra.mxu0 0.0
  %737 = vmatprep.subr.mxu0 0.0
  %738 = vmatpush1.msra.mxu0 0.0
  %739 = vmatprep.subr.mxu0 0.0
  %740 = vmatpush1.msra.mxu0 0.0
  %741 = vmatprep.subr.mxu0 0.0
  %742 = vmatpush1.msra.mxu0 0.0
  %743 = vmatprep.subr.mxu0 0.0
  %744 = vmatpush1.msra.mxu0 0.0
  %745 = vmatprep.subr.mxu0 0.0
  %746 = vmatpush1.msra.mxu0 0.0
  %747 = vmatprep.subr.mxu0 0.0
  %748 = vmatpush1.msra.mxu0 0.0
  %749 = vmatprep.subr.mxu0 0.0
  %750 = vmatpush1.msra.mxu0 0.0
  %751 = vmatprep.mubr.f32.mxu0 0.0
  %752 = vmatmul.mubr.f32.gmra.mrb[0].mxu0 %v587
  %v753 = vpop.f32.mrb[0].mxu0
  %v754 = vadd.f32 0.0, %v753
  %v755 = vpop.f32.mrb[0].mxu0
  %756 = vdwg.mxu0
  %v757 = vadd.f32 %v686, %v754
  %v758 = vxor.u32 %v757, 2147483648
  %v759 = vmul.f32 %v758, 1.442695
  %v760 = vpow.pop %v759
  %v761 = vadd.f32 %v760, 1.0
  %v762 = vrcp.pop %v761
  %v763 = vmul.f32 1.0, %v762
  %v764 = vmul.f32 %v763, 2.0
  %v765 = vsub.f32 %v764, 1.0
  %v766 = vmul.f32 %v763, %v502
  %768 = vrot.lane.b32.xlu0 %v765, 64
  %v769 = vpop.permute.xlu0 %768
  %v771 = vmul.f32 %v763, %v769
  %773 = vrot.lane.b32.xlu0 %v771, 32
  %v774 = vpop.permute.xlu0 %773
  %v776 = vadd.f32 %v766, %v774
  %v777 = vtanh.pop %v776
  %779 = vrot.lane.b32.xlu0 %v777, 64
  %v780 = vpop.permute.xlu0 %779
  %v782 = vmul.f32 %v763, %v780
  %784 = vrot.lane.b32.xlu0 %v684, 32
  %v785 = vpop.permute.xlu0 %784
  %v786 = vsel %vm134, %v785, 0
  %788 = vmatprep.subr.mxu0 0.0
  %789 = vmatpush1.msra.mxu0 %v42
  %790 = vmatprep.subr.mxu0 0.0
  %791 = vmatpush1.msra.mxu0 %v43
  %792 = vmatprep.subr.mxu0 0.0
  %793 = vmatpush1.msra.mxu0 %v44
  %794 = vmatprep.subr.mxu0 0.0
  %795 = vmatpush1.msra.mxu0 %v45
  %796 = vmatprep.subr.mxu0 0.0
  %797 = vmatpush1.msra.mxu0 0.0
  %798 = vmatprep.subr.mxu0 0.0
  %799 = vmatpush1.msra.mxu0 0.0
  %800 = vmatprep.subr.mxu0 0.0
  %801 = vmatpush1.msra.mxu0 0.0
  %802 = vmatprep.subr.mxu0 0.0
  %803 = vmatpush1.msra.mxu0 0.0
  %804 = vmatprep.subr.mxu0 0.0
  %805 = vmatpush1.msra.mxu0 0.0
  %806 = vmatprep.subr.mxu0 0.0
  %807 = vmatpush1.msra.mxu0 0.0
  %808 = vmatprep.subr.mxu0 0.0
  %809 = vmatpush1.msra.mxu0 0.0
  %810 = vmatprep.subr.mxu0 0.0
  %811 = vmatpush1.msra.mxu0 0.0
  %812 = vmatprep.subr.mxu0 0.0
  %813 = vmatpush1.msra.mxu0 0.0
  %814 = vmatprep.subr.mxu0 0.0
  %815 = vmatpush1.msra.mxu0 0.0
  %816 = vmatprep.subr.mxu0 0.0
  %817 = vmatpush1.msra.mxu0 0.0
  %818 = vmatprep.subr.mxu0 0.0
  %819 = vmatpush1.msra.mxu0 0.0
  %820 = vmatprep.subr.mxu0 0.0
  %821 = vmatpush1.msra.mxu0 0.0
  %822 = vmatprep.subr.mxu0 0.0
  %823 = vmatpush1.msra.mxu0 0.0
  %824 = vmatprep.subr.mxu0 0.0
  %825 = vmatpush1.msra.mxu0 0.0
  %826 = vmatprep.subr.mxu0 0.0
  %827 = vmatpush1.msra.mxu0 0.0
  %828 = vmatprep.subr.mxu0 0.0
  %829 = vmatpush1.msra.mxu0 0.0
  %830 = vmatprep.subr.mxu0 0.0
  %831 = vmatpush1.msra.mxu0 0.0
  %832 = vmatprep.subr.mxu0 0.0
  %833 = vmatpush1.msra.mxu0 0.0
  %834 = vmatprep.subr.mxu0 0.0
  %835 = vmatpush1.msra.mxu0 0.0
  %836 = vmatprep.subr.mxu0 0.0
  %837 = vmatpush1.msra.mxu0 0.0
  %838 = vmatprep.subr.mxu0 0.0
  %839 = vmatpush1.msra.mxu0 0.0
  %840 = vmatprep.subr.mxu0 0.0
  %841 = vmatpush1.msra.mxu0 0.0
  %842 = vmatprep.subr.mxu0 0.0
  %843 = vmatpush1.msra.mxu0 0.0
  %844 = vmatprep.subr.mxu0 0.0
  %845 = vmatpush1.msra.mxu0 0.0
  %846 = vmatprep.subr.mxu0 0.0
  %847 = vmatpush1.msra.mxu0 0.0
  %848 = vmatprep.subr.mxu0 0.0
  %849 = vmatpush1.msra.mxu0 0.0
  %850 = vmatprep.subr.mxu0 0.0
  %851 = vmatpush1.msra.mxu0 0.0
  %852 = vmatprep.mubr.f32.mxu0 0.0
  %853 = vmatmul.mubr.f32.gmra.mrb[0].mxu0 %v786
  %v854 = vpop.f32.mrb[0].mxu0
  %v855 = vadd.f32 0.0, %v854
  %v856 = vpop.f32.mrb[0].mxu0
  %857 = vdwg.mxu0
  %859 = vrot.lane.b32.xlu0 %v782, 32
  %v860 = vpop.permute.xlu0 %859
  %v861 = vsel %vm134, %v860, 0
  %863 = vmatprep.subr.mxu0 0.0
  %864 = vmatpush1.msra.mxu0 %v38
  %865 = vmatprep.subr.mxu0 0.0
  %866 = vmatpush1.msra.mxu0 %v39
  %867 = vmatprep.subr.mxu0 0.0
  %868 = vmatpush1.msra.mxu0 %v40
  %869 = vmatprep.subr.mxu0 0.0
  %870 = vmatpush1.msra.mxu0 %v41
  %871 = vmatprep.subr.mxu0 0.0
  %872 = vmatpush1.msra.mxu0 0.0
  %873 = vmatprep.subr.mxu0 0.0
  %874 = vmatpush1.msra.mxu0 0.0
  %875 = vmatprep.subr.mxu0 0.0
  %876 = vmatpush1.msra.mxu0 0.0
  %877 = vmatprep.subr.mxu0 0.0
  %878 = vmatpush1.msra.mxu0 0.0
  %879 = vmatprep.subr.mxu0 0.0
  %880 = vmatpush1.msra.mxu0 0.0
  %881 = vmatprep.subr.mxu0 0.0
  %882 = vmatpush1.msra.mxu0 0.0
  %883 = vmatprep.subr.mxu0 0.0
  %884 = vmatpush1.msra.mxu0 0.0
  %885 = vmatprep.subr.mxu0 0.0
  %886 = vmatpush1.msra.mxu0 0.0
  %887 = vmatprep.subr.mxu0 0.0
  %888 = vmatpush1.msra.mxu0 0.0
  %889 = vmatprep.subr.mxu0 0.0
  %890 = vmatpush1.msra.mxu0 0.0
  %891 = vmatprep.subr.mxu0 0.0
  %892 = vmatpush1.msra.mxu0 0.0
  %893 = vmatprep.subr.mxu0 0.0
  %894 = vmatpush1.msra.mxu0 0.0
  %895 = vmatprep.subr.mxu0 0.0
  %896 = vmatpush1.msra.mxu0 0.0
  %897 = vmatprep.subr.mxu0 0.0
  %898 = vmatpush1.msra.mxu0 0.0
  %899 = vmatprep.subr.mxu0 0.0
  %900 = vmatpush1.msra.mxu0 0.0
  %901 = vmatprep.subr.mxu0 0.0
  %902 = vmatpush1.msra.mxu0 0.0
  %903 = vmatprep.subr.mxu0 0.0
  %904 = vmatpush1.msra.mxu0 0.0
  %905 = vmatprep.subr.mxu0 0.0
  %906 = vmatpush1.msra.mxu0 0.0
  %907 = vmatprep.subr.mxu0 0.0
  %908 = vmatpush1.msra.mxu0 0.0
  %909 = vmatprep.subr.mxu0 0.0
  %910 = vmatpush1.msra.mxu0 0.0
  %911 = vmatprep.subr.mxu0 0.0
  %912 = vmatpush1.msra.mxu0 0.0
  %913 = vmatprep.subr.mxu0 0.0
  %914 = vmatpush1.msra.mxu0 0.0
  %915 = vmatprep.subr.mxu0 0.0
  %916 = vmatpush1.msra.mxu0 0.0
  %917 = vmatprep.subr.mxu0 0.0
  %918 = vmatpush1.msra.mxu0 0.0
  %919 = vmatprep.subr.mxu0 0.0
  %920 = vmatpush1.msra.mxu0 0.0
  %921 = vmatprep.subr.mxu0 0.0
  %922 = vmatpush1.msra.mxu0 0.0
  %923 = vmatprep.subr.mxu0 0.0
  %924 = vmatpush1.msra.mxu0 0.0
  %925 = vmatprep.subr.mxu0 0.0
  %926 = vmatpush1.msra.mxu0 0.0
  %927 = vmatprep.mubr.f32.mxu0 0.0
  %928 = vmatmul.mubr.f32.gmra.mrb[0].mxu0 %v861
  %v929 = vpop.f32.mrb[0].mxu0
  %v930 = vadd.f32 %v855, %v929
  %v931 = vpop.f32.mrb[0].mxu0
  %932 = vdwg.mxu0
  %v933 = vadd.f32 %v930, %v383
  %v934 = vxor.u32 %v933, 2147483648
  %v935 = vmul.f32 %v934, 1.442695
  %v936 = vpow.pop %v935
  %v937 = vadd.f32 %v936, 1.0
  %v938 = vrcp.pop %v937
  %v939 = vmul.f32 1.0, %v938
  %v940 = vmul.f32 %v939, 2.0
  %v941 = vsub.f32 %v940, 1.0
  %v942 = vmul.f32 %v939, %v678
  %944 = vrot.lane.b32.xlu0 %v941, 64
  %v945 = vpop.permute.xlu0 %944
  %v947 = vmul.f32 %v939, %v945
  %949 = vrot.lane.b32.xlu0 %v947, 32
  %v950 = vpop.permute.xlu0 %949
  %v952 = vadd.f32 %v942, %v950
  %v953 = vtanh.pop %v952
  %955 = vrot.lane.b32.xlu0 %v953, 64
  %v956 = vpop.permute.xlu0 %955
  %v958 = vmul.f32 %v939, %v956
  %s959 = scalar_lea.vmem [#allocation2], 24
  %v960 = vld [vmem:[%s959] sm:$0xff]
  %961 = vmatprep.subr.mxu0 0.0
  %962 = vmatpush1.msra.mxu0 %v34
  %963 = vmatprep.subr.mxu0 0.0
  %964 = vmatpush1.msra.mxu0 %v35
  %965 = vmatprep.subr.mxu0 0.0
  %966 = vmatpush1.msra.mxu0 %v36
  %967 = vmatprep.subr.mxu0 0.0
  %968 = vmatpush1.msra.mxu0 %v37
  %969 = vmatprep.subr.mxu0 0.0
  %970 = vmatpush1.msra.mxu0 0.0
  %971 = vmatprep.subr.mxu0 0.0
  %972 = vmatpush1.msra.mxu0 0.0
  %973 = vmatprep.subr.mxu0 0.0
  %974 = vmatpush1.msra.mxu0 0.0
  %975 = vmatprep.subr.mxu0 0.0
  %976 = vmatpush1.msra.mxu0 0.0
  %977 = vmatprep.subr.mxu0 0.0
  %978 = vmatpush1.msra.mxu0 0.0
  %979 = vmatprep.subr.mxu0 0.0
  %980 = vmatpush1.msra.mxu0 0.0
  %981 = vmatprep.subr.mxu0 0.0
  %982 = vmatpush1.msra.mxu0 0.0
  %983 = vmatprep.subr.mxu0 0.0
  %984 = vmatpush1.msra.mxu0 0.0
  %985 = vmatprep.subr.mxu0 0.0
  %986 = vmatpush1.msra.mxu0 0.0
  %987 = vmatprep.subr.mxu0 0.0
  %988 = vmatpush1.msra.mxu0 0.0
  %989 = vmatprep.subr.mxu0 0.0
  %990 = vmatpush1.msra.mxu0 0.0
  %991 = vmatprep.subr.mxu0 0.0
  %992 = vmatpush1.msra.mxu0 0.0
  %993 = vmatprep.subr.mxu0 0.0
  %994 = vmatpush1.msra.mxu0 0.0
  %995 = vmatprep.subr.mxu0 0.0
  %996 = vmatpush1.msra.mxu0 0.0
  %997 = vmatprep.subr.mxu0 0.0
  %998 = vmatpush1.msra.mxu0 0.0
  %999 = vmatprep.subr.mxu0 0.0
  %1000 = vmatpush1.msra.mxu0 0.0
  %1001 = vmatprep.subr.mxu0 0.0
  %1002 = vmatpush1.msra.mxu0 0.0
  %1003 = vmatprep.subr.mxu0 0.0
  %1004 = vmatpush1.msra.mxu0 0.0
  %1005 = vmatprep.subr.mxu0 0.0
  %1006 = vmatpush1.msra.mxu0 0.0
  %1007 = vmatprep.subr.mxu0 0.0
  %1008 = vmatpush1.msra.mxu0 0.0
  %1009 = vmatprep.subr.mxu0 0.0
  %1010 = vmatpush1.msra.mxu0 0.0
  %1011 = vmatprep.subr.mxu0 0.0
  %1012 = vmatpush1.msra.mxu0 0.0
  %1013 = vmatprep.subr.mxu0 0.0
  %1014 = vmatpush1.msra.mxu0 0.0
  %1015 = vmatprep.subr.mxu0 0.0
  %1016 = vmatpush1.msra.mxu0 0.0
  %1017 = vmatprep.subr.mxu0 0.0
  %1018 = vmatpush1.msra.mxu0 0.0
  %1019 = vmatprep.subr.mxu0 0.0
  %1020 = vmatpush1.msra.mxu0 0.0
  %1021 = vmatprep.subr.mxu0 0.0
  %1022 = vmatpush1.msra.mxu0 0.0
  %1023 = vmatprep.subr.mxu0 0.0
  %1024 = vmatpush1.msra.mxu0 0.0
  %1025 = vmatprep.mubr.f32.mxu0 0.0
  %1026 = vmatmul.mubr.f32.gmra.mrb[0].mxu0 %v861
  %v1027 = vpop.f32.mrb[0].mxu0
  %v1028 = vadd.f32 0.0, %v1027
  %v1029 = vpop.f32.mrb[0].mxu0
  %1030 = vdwg.mxu0
  %v1031 = vadd.f32 %v960, %v1028
  %v1032 = vxor.u32 %v1031, 2147483648
  %v1033 = vmul.f32 %v1032, 1.442695
  %v1034 = vpow.pop %v1033
  %v1035 = vadd.f32 %v1034, 1.0
  %v1036 = vrcp.pop %v1035
  %v1037 = vmul.f32 1.0, %v1036
  %v1038 = vmul.f32 %v1037, 2.0
  %v1039 = vsub.f32 %v1038, 1.0
  %v1040 = vmul.f32 %v1037, %v776
  %1042 = vrot.lane.b32.xlu0 %v1039, 64
  %v1043 = vpop.permute.xlu0 %1042
  %v1045 = vmul.f32 %v1037, %v1043
  %1047 = vrot.lane.b32.xlu0 %v1045, 32
  %v1048 = vpop.permute.xlu0 %1047
  %v1050 = vadd.f32 %v1040, %v1048
  %v1051 = vtanh.pop %v1050
  %1053 = vrot.lane.b32.xlu0 %v1051, 64
  %v1054 = vpop.permute.xlu0 %1053
  %v1056 = vmul.f32 %v1037, %v1054
  %1058 = vrot.lane.b32.xlu0 %v958, 32
  %v1059 = vpop.permute.xlu0 %1058
  %v1060 = vsel %vm134, %v1059, 0
  %1062 = vmatprep.subr.mxu0 0.0
  %1063 = vmatpush1.msra.mxu0 %v42
  %1064 = vmatprep.subr.mxu0 0.0
  %1065 = vmatpush1.msra.mxu0 %v43
  %1066 = vmatprep.subr.mxu0 0.0
  %1067 = vmatpush1.msra.mxu0 %v44
  %1068 = vmatprep.subr.mxu0 0.0
  %1069 = vmatpush1.msra.mxu0 %v45
  %1070 = vmatprep.subr.mxu0 0.0
  %1071 = vmatpush1.msra.mxu0 0.0
  %1072 = vmatprep.subr.mxu0 0.0
  %1073 = vmatpush1.msra.mxu0 0.0
  %1074 = vmatprep.subr.mxu0 0.0
  %1075 = vmatpush1.msra.mxu0 0.0
  %1076 = vmatprep.subr.mxu0 0.0
  %1077 = vmatpush1.msra.mxu0 0.0
  %1078 = vmatprep.subr.mxu0 0.0
  %1079 = vmatpush1.msra.mxu0 0.0
  %1080 = vmatprep.subr.mxu0 0.0
  %1081 = vmatpush1.msra.mxu0 0.0
  %1082 = vmatprep.subr.mxu0 0.0
  %1083 = vmatpush1.msra.mxu0 0.0
  %1084 = vmatprep.subr.mxu0 0.0
  %1085 = vmatpush1.msra.mxu0 0.0
  %1086 = vmatprep.subr.mxu0 0.0
  %1087 = vmatpush1.msra.mxu0 0.0
  %1088 = vmatprep.subr.mxu0 0.0
  %1089 = vmatpush1.msra.mxu0 0.0
  %1090 = vmatprep.subr.mxu0 0.0
  %1091 = vmatpush1.msra.mxu0 0.0
  %1092 = vmatprep.subr.mxu0 0.0
  %1093 = vmatpush1.msra.mxu0 0.0
  %1094 = vmatprep.subr.mxu0 0.0
  %1095 = vmatpush1.msra.mxu0 0.0
  %1096 = vmatprep.subr.mxu0 0.0
  %1097 = vmatpush1.msra.mxu0 0.0
  %1098 = vmatprep.subr.mxu0 0.0
  %1099 = vmatpush1.msra.mxu0 0.0
  %1100 = vmatprep.subr.mxu0 0.0
  %1101 = vmatpush1.msra.mxu0 0.0
  %1102 = vmatprep.subr.mxu0 0.0
  %1103 = vmatpush1.msra.mxu0 0.0
  %1104 = vmatprep.subr.mxu0 0.0
  %1105 = vmatpush1.msra.mxu0 0.0
  %1106 = vmatprep.subr.mxu0 0.0
  %1107 = vmatpush1.msra.mxu0 0.0
  %1108 = vmatprep.subr.mxu0 0.0
  %1109 = vmatpush1.msra.mxu0 0.0
  %1110 = vmatprep.subr.mxu0 0.0
  %1111 = vmatpush1.msra.mxu0 0.0
  %1112 = vmatprep.subr.mxu0 0.0
  %1113 = vmatpush1.msra.mxu0 0.0
  %1114 = vmatprep.subr.mxu0 0.0
  %1115 = vmatpush1.msra.mxu0 0.0
  %1116 = vmatprep.subr.mxu0 0.0
  %1117 = vmatpush1.msra.mxu0 0.0
  %1118 = vmatprep.subr.mxu0 0.0
  %1119 = vmatpush1.msra.mxu0 0.0
  %1120 = vmatprep.subr.mxu0 0.0
  %1121 = vmatpush1.msra.mxu0 0.0
  %1122 = vmatprep.subr.mxu0 0.0
  %1123 = vmatpush1.msra.mxu0 0.0
  %1124 = vmatprep.subr.mxu0 0.0
  %1125 = vmatpush1.msra.mxu0 0.0
  %1126 = vmatprep.mubr.f32.mxu0 0.0
  %1127 = vmatmul.mubr.f32.gmra.mrb[0].mxu0 %v1060
  %v1128 = vpop.f32.mrb[0].mxu0
  %v1129 = vadd.f32 0.0, %v1128
  %v1130 = vpop.f32.mrb[0].mxu0
  %1131 = vdwg.mxu0
  %1133 = vrot.lane.b32.xlu0 %v1056, 32
  %v1134 = vpop.permute.xlu0 %1133
  %v1135 = vsel %vm134, %v1134, 0
  %1137 = vmatprep.subr.mxu0 0.0
  %1138 = vmatpush1.msra.mxu0 %v38
  %1139 = vmatprep.subr.mxu0 0.0
  %1140 = vmatpush1.msra.mxu0 %v39
  %1141 = vmatprep.subr.mxu0 0.0
  %1142 = vmatpush1.msra.mxu0 %v40
  %1143 = vmatprep.subr.mxu0 0.0
  %1144 = vmatpush1.msra.mxu0 %v41
  %1145 = vmatprep.subr.mxu0 0.0
  %1146 = vmatpush1.msra.mxu0 0.0
  %1147 = vmatprep.subr.mxu0 0.0
  %1148 = vmatpush1.msra.mxu0 0.0
  %1149 = vmatprep.subr.mxu0 0.0
  %1150 = vmatpush1.msra.mxu0 0.0
  %1151 = vmatprep.subr.mxu0 0.0
  %1152 = vmatpush1.msra.mxu0 0.0
  %1153 = vmatprep.subr.mxu0 0.0
  %1154 = vmatpush1.msra.mxu0 0.0
  %1155 = vmatprep.subr.mxu0 0.0
  %1156 = vmatpush1.msra.mxu0 0.0
  %1157 = vmatprep.subr.mxu0 0.0
  %1158 = vmatpush1.msra.mxu0 0.0
  %1159 = vmatprep.subr.mxu0 0.0
  %1160 = vmatpush1.msra.mxu0 0.0
  %1161 = vmatprep.subr.mxu0 0.0
  %1162 = vmatpush1.msra.mxu0 0.0
  %1163 = vmatprep.subr.mxu0 0.0
  %1164 = vmatpush1.msra.mxu0 0.0
  %1165 = vmatprep.subr.mxu0 0.0
  %1166 = vmatpush1.msra.mxu0 0.0
  %1167 = vmatprep.subr.mxu0 0.0
  %1168 = vmatpush1.msra.mxu0 0.0
  %1169 = vmatprep.subr.mxu0 0.0
  %1170 = vmatpush1.msra.mxu0 0.0
  %1171 = vmatprep.subr.mxu0 0.0
  %1172 = vmatpush1.msra.mxu0 0.0
  %1173 = vmatprep.subr.mxu0 0.0
  %1174 = vmatpush1.msra.mxu0 0.0
  %1175 = vmatprep.subr.mxu0 0.0
  %1176 = vmatpush1.msra.mxu0 0.0
  %1177 = vmatprep.subr.mxu0 0.0
  %1178 = vmatpush1.msra.mxu0 0.0
  %1179 = vmatprep.subr.mxu0 0.0
  %1180 = vmatpush1.msra.mxu0 0.0
  %1181 = vmatprep.subr.mxu0 0.0
  %1182 = vmatpush1.msra.mxu0 0.0
  %1183 = vmatprep.subr.mxu0 0.0
  %1184 = vmatpush1.msra.mxu0 0.0
  %1185 = vmatprep.subr.mxu0 0.0
  %1186 = vmatpush1.msra.mxu0 0.0
  %1187 = vmatprep.subr.mxu0 0.0
  %1188 = vmatpush1.msra.mxu0 0.0
  %1189 = vmatprep.subr.mxu0 0.0
  %1190 = vmatpush1.msra.mxu0 0.0
  %1191 = vmatprep.subr.mxu0 0.0
  %1192 = vmatpush1.msra.mxu0 0.0
  %1193 = vmatprep.subr.mxu0 0.0
  %1194 = vmatpush1.msra.mxu0 0.0
  %1195 = vmatprep.subr.mxu0 0.0
  %1196 = vmatpush1.msra.mxu0 0.0
  %1197 = vmatprep.subr.mxu0 0.0
  %1198 = vmatpush1.msra.mxu0 0.0
  %1199 = vmatprep.subr.mxu0 0.0
  %1200 = vmatpush1.msra.mxu0 0.0
  %1201 = vmatprep.mubr.f32.mxu0 0.0
  %1202 = vmatmul.mubr.f32.gmra.mrb[0].mxu0 %v1135
  %v1203 = vpop.f32.mrb[0].mxu0
  %v1204 = vadd.f32 %v1129, %v1203
  %v1205 = vpop.f32.mrb[0].mxu0
  %1206 = vdwg.mxu0
  %v1207 = vadd.f32 %v1204, %v383
  %v1208 = vxor.u32 %v1207, 2147483648
  %v1209 = vmul.f32 %v1208, 1.442695
  %v1210 = vpow.pop %v1209
  %v1211 = vadd.f32 %v1210, 1.0
  %v1212 = vrcp.pop %v1211
  %v1213 = vmul.f32 1.0, %v1212
  %v1214 = vmul.f32 %v1213, 2.0
  %v1215 = vsub.f32 %v1214, 1.0
  %v1216 = vmul.f32 %v1213, %v952
  %1218 = vrot.lane.b32.xlu0 %v1215, 64
  %v1219 = vpop.permute.xlu0 %1218
  %v1221 = vmul.f32 %v1213, %v1219
  %1223 = vrot.lane.b32.xlu0 %v1221, 32
  %v1224 = vpop.permute.xlu0 %1223
  %v1226 = vadd.f32 %v1216, %v1224
  %v1227 = vtanh.pop %v1226
  %1229 = vrot.lane.b32.xlu0 %v1227, 64
  %v1230 = vpop.permute.xlu0 %1229
  %v1232 = vmul.f32 %v1213, %v1230
  %s1233 = scalar_lea.vmem [#allocation2], 32
  %v1234 = vld [vmem:[%s1233] sm:$0xff]
  %1235 = vmatprep.subr.mxu0 0.0
  %1236 = vmatpush1.msra.mxu0 %v34
  %1237 = vmatprep.subr.mxu0 0.0
  %1238 = vmatpush1.msra.mxu0 %v35
  %1239 = vmatprep.subr.mxu0 0.0
  %1240 = vmatpush1.msra.mxu0 %v36
  %1241 = vmatprep.subr.mxu0 0.0
  %1242 = vmatpush1.msra.mxu0 %v37
  %1243 = vmatprep.subr.mxu0 0.0
  %1244 = vmatpush1.msra.mxu0 0.0
  %1245 = vmatprep.subr.mxu0 0.0
  %1246 = vmatpush1.msra.mxu0 0.0
  %1247 = vmatprep.subr.mxu0 0.0
  %1248 = vmatpush1.msra.mxu0 0.0
  %1249 = vmatprep.subr.mxu0 0.0
  %1250 = vmatpush1.msra.mxu0 0.0
  %1251 = vmatprep.subr.mxu0 0.0
  %1252 = vmatpush1.msra.mxu0 0.0
  %1253 = vmatprep.subr.mxu0 0.0
  %1254 = vmatpush1.msra.mxu0 0.0
  %1255 = vmatprep.subr.mxu0 0.0
  %1256 = vmatpush1.msra.mxu0 0.0
  %1257 = vmatprep.subr.mxu0 0.0
  %1258 = vmatpush1.msra.mxu0 0.0
  %1259 = vmatprep.subr.mxu0 0.0
  %1260 = vmatpush1.msra.mxu0 0.0
  %1261 = vmatprep.subr.mxu0 0.0
  %1262 = vmatpush1.msra.mxu0 0.0
  %1263 = vmatprep.subr.mxu0 0.0
  %1264 = vmatpush1.msra.mxu0 0.0
  %1265 = vmatprep.subr.mxu0 0.0
  %1266 = vmatpush1.msra.mxu0 0.0
  %1267 = vmatprep.subr.mxu0 0.0
  %1268 = vmatpush1.msra.mxu0 0.0
  %1269 = vmatprep.subr.mxu0 0.0
  %1270 = vmatpush1.msra.mxu0 0.0
  %1271 = vmatprep.subr.mxu0 0.0
  %1272 = vmatpush1.msra.mxu0 0.0
  %1273 = vmatprep.subr.mxu0 0.0
  %1274 = vmatpush1.msra.mxu0 0.0
  %1275 = vmatprep.subr.mxu0 0.0
  %1276 = vmatpush1.msra.mxu0 0.0
  %1277 = vmatprep.subr.mxu0 0.0
  %1278 = vmatpush1.msra.mxu0 0.0
  %1279 = vmatprep.subr.mxu0 0.0
  %1280 = vmatpush1.msra.mxu0 0.0
  %1281 = vmatprep.subr.mxu0 0.0
  %1282 = vmatpush1.msra.mxu0 0.0
  %1283 = vmatprep.subr.mxu0 0.0
  %1284 = vmatpush1.msra.mxu0 0.0
  %1285 = vmatprep.subr.mxu0 0.0
  %1286 = vmatpush1.msra.mxu0 0.0
  %1287 = vmatprep.subr.mxu0 0.0
  %1288 = vmatpush1.msra.mxu0 0.0
  %1289 = vmatprep.subr.mxu0 0.0
  %1290 = vmatpush1.msra.mxu0 0.0
  %1291 = vmatprep.subr.mxu0 0.0
  %1292 = vmatpush1.msra.mxu0 0.0
  %1293 = vmatprep.subr.mxu0 0.0
  %1294 = vmatpush1.msra.mxu0 0.0
  %1295 = vmatprep.subr.mxu0 0.0
  %1296 = vmatpush1.msra.mxu0 0.0
  %1297 = vmatprep.subr.mxu0 0.0
  %1298 = vmatpush1.msra.mxu0 0.0
  %1299 = vmatprep.mubr.f32.mxu0 0.0
  %1300 = vmatmul.mubr.f32.gmra.mrb[0].mxu0 %v1135
  %v1301 = vpop.f32.mrb[0].mxu0
  %v1302 = vadd.f32 0.0, %v1301
  %v1303 = vpop.f32.mrb[0].mxu0
  %1304 = vdwg.mxu0
  %v1305 = vadd.f32 %v1234, %v1302
  %v1306 = vxor.u32 %v1305, 2147483648
  %v1307 = vmul.f32 %v1306, 1.442695
  %v1308 = vpow.pop %v1307
  %v1309 = vadd.f32 %v1308, 1.0
  %v1310 = vrcp.pop %v1309
  %v1311 = vmul.f32 1.0, %v1310
  %v1312 = vmul.f32 %v1311, 2.0
  %v1313 = vsub.f32 %v1312, 1.0
  %v1314 = vmul.f32 %v1311, %v1050
  %1316 = vrot.lane.b32.xlu0 %v1313, 64
  %v1317 = vpop.permute.xlu0 %1316
  %v1319 = vmul.f32 %v1311, %v1317
  %1321 = vrot.lane.b32.xlu0 %v1319, 32
  %v1322 = vpop.permute.xlu0 %1321
  %v1324 = vadd.f32 %v1314, %v1322
  %v1325 = vtanh.pop %v1324
  %1327 = vrot.lane.b32.xlu0 %v1325, 64
  %v1328 = vpop.permute.xlu0 %1327
  %v1330 = vmul.f32 %v1311, %v1328
  %1332 = vrot.lane.b32.xlu0 %v1232, 32
  %v1333 = vpop.permute.xlu0 %1332
  %v1334 = vsel %vm134, %v1333, 0
  %1336 = vmatprep.subr.mxu0 0.0
  %1337 = vmatpush1.msra.mxu0 %v42
  %1338 = vmatprep.subr.mxu0 0.0
  %1339 = vmatpush1.msra.mxu0 %v43
  %1340 = vmatprep.subr.mxu0 0.0
  %1341 = vmatpush1.msra.mxu0 %v44
  %1342 = vmatprep.subr.mxu0 0.0
  %1343 = vmatpush1.msra.mxu0 %v45
  %1344 = vmatprep.subr.mxu0 0.0
  %1345 = vmatpush1.msra.mxu0 0.0
  %1346 = vmatprep.subr.mxu0 0.0
  %1347 = vmatpush1.msra.mxu0 0.0
  %1348 = vmatprep.subr.mxu0 0.0
  %1349 = vmatpush1.msra.mxu0 0.0
  %1350 = vmatprep.subr.mxu0 0.0
  %1351 = vmatpush1.msra.mxu0 0.0
  %1352 = vmatprep.subr.mxu0 0.0
  %1353 = vmatpush1.msra.mxu0 0.0
  %1354 = vmatprep.subr.mxu0 0.0
  %1355 = vmatpush1.msra.mxu0 0.0
  %1356 = vmatprep.subr.mxu0 0.0
  %1357 = vmatpush1.msra.mxu0 0.0
  %1358 = vmatprep.subr.mxu0 0.0
  %1359 = vmatpush1.msra.mxu0 0.0
  %1360 = vmatprep.subr.mxu0 0.0
  %1361 = vmatpush1.msra.mxu0 0.0
  %1362 = vmatprep.subr.mxu0 0.0
  %1363 = vmatpush1.msra.mxu0 0.0
  %1364 = vmatprep.subr.mxu0 0.0
  %1365 = vmatpush1.msra.mxu0 0.0
  %1366 = vmatprep.subr.mxu0 0.0
  %1367 = vmatpush1.msra.mxu0 0.0
  %1368 = vmatprep.subr.mxu0 0.0
  %1369 = vmatpush1.msra.mxu0 0.0
  %1370 = vmatprep.subr.mxu0 0.0
  %1371 = vmatpush1.msra.mxu0 0.0
  %1372 = vmatprep.subr.mxu0 0.0
  %1373 = vmatpush1.msra.mxu0 0.0
  %1374 = vmatprep.subr.mxu0 0.0
  %1375 = vmatpush1.msra.mxu0 0.0
  %1376 = vmatprep.subr.mxu0 0.0
  %1377 = vmatpush1.msra.mxu0 0.0
  %1378 = vmatprep.subr.mxu0 0.0
  %1379 = vmatpush1.msra.mxu0 0.0
  %1380 = vmatprep.subr.mxu0 0.0
  %1381 = vmatpush1.msra.mxu0 0.0
  %1382 = vmatprep.subr.mxu0 0.0
  %1383 = vmatpush1.msra.mxu0 0.0
  %1384 = vmatprep.subr.mxu0 0.0
  %1385 = vmatpush1.msra.mxu0 0.0
  %1386 = vmatprep.subr.mxu0 0.0
  %1387 = vmatpush1.msra.mxu0 0.0
  %1388 = vmatprep.subr.mxu0 0.0
  %1389 = vmatpush1.msra.mxu0 0.0
  %1390 = vmatprep.subr.mxu0 0.0
  %1391 = vmatpush1.msra.mxu0 0.0
  %1392 = vmatprep.subr.mxu0 0.0
  %1393 = vmatpush1.msra.mxu0 0.0
  %1394 = vmatprep.subr.mxu0 0.0
  %1395 = vmatpush1.msra.mxu0 0.0
  %1396 = vmatprep.subr.mxu0 0.0
  %1397 = vmatpush1.msra.mxu0 0.0
  %1398 = vmatprep.subr.mxu0 0.0
  %1399 = vmatpush1.msra.mxu0 0.0
  %1400 = vmatprep.mubr.f32.mxu0 0.0
  %1401 = vmatmul.mubr.f32.gmra.mrb[0].mxu0 %v1334
  %v1402 = vpop.f32.mrb[0].mxu0
  %v1403 = vadd.f32 0.0, %v1402
  %v1404 = vpop.f32.mrb[0].mxu0
  %1405 = vdwg.mxu0
  %1407 = vrot.lane.b32.xlu0 %v1330, 32
  %v1408 = vpop.permute.xlu0 %1407
  %v1409 = vsel %vm134, %v1408, 0
  %1411 = vmatprep.subr.mxu0 0.0
  %1412 = vmatpush1.msra.mxu0 %v38
  %1413 = vmatprep.subr.mxu0 0.0
  %1414 = vmatpush1.msra.mxu0 %v39
  %1415 = vmatprep.subr.mxu0 0.0
  %1416 = vmatpush1.msra.mxu0 %v40
  %1417 = vmatprep.subr.mxu0 0.0
  %1418 = vmatpush1.msra.mxu0 %v41
  %1419 = vmatprep.subr.mxu0 0.0
  %1420 = vmatpush1.msra.mxu0 0.0
  %1421 = vmatprep.subr.mxu0 0.0
  %1422 = vmatpush1.msra.mxu0 0.0
  %1423 = vmatprep.subr.mxu0 0.0
  %1424 = vmatpush1.msra.mxu0 0.0
  %1425 = vmatprep.subr.mxu0 0.0
  %1426 = vmatpush1.msra.mxu0 0.0
  %1427 = vmatprep.subr.mxu0 0.0
  %1428 = vmatpush1.msra.mxu0 0.0
  %1429 = vmatprep.subr.mxu0 0.0
  %1430 = vmatpush1.msra.mxu0 0.0
  %1431 = vmatprep.subr.mxu0 0.0
  %1432 = vmatpush1.msra.mxu0 0.0
  %1433 = vmatprep.subr.mxu0 0.0
  %1434 = vmatpush1.msra.mxu0 0.0
  %1435 = vmatprep.subr.mxu0 0.0
  %1436 = vmatpush1.msra.mxu0 0.0
  %1437 = vmatprep.subr.mxu0 0.0
  %1438 = vmatpush1.msra.mxu0 0.0
  %1439 = vmatprep.subr.mxu0 0.0
  %1440 = vmatpush1.msra.mxu0 0.0
  %1441 = vmatprep.subr.mxu0 0.0
  %1442 = vmatpush1.msra.mxu0 0.0
  %1443 = vmatprep.subr.mxu0 0.0
  %1444 = vmatpush1.msra.mxu0 0.0
  %1445 = vmatprep.subr.mxu0 0.0
  %1446 = vmatpush1.msra.mxu0 0.0
  %1447 = vmatprep.subr.mxu0 0.0
  %1448 = vmatpush1.msra.mxu0 0.0
  %1449 = vmatprep.subr.mxu0 0.0
  %1450 = vmatpush1.msra.mxu0 0.0
  %1451 = vmatprep.subr.mxu0 0.0
  %1452 = vmatpush1.msra.mxu0 0.0
  %1453 = vmatprep.subr.mxu0 0.0
  %1454 = vmatpush1.msra.mxu0 0.0
  %1455 = vmatprep.subr.mxu0 0.0
  %1456 = vmatpush1.msra.mxu0 0.0
  %1457 = vmatprep.subr.mxu0 0.0
  %1458 = vmatpush1.msra.mxu0 0.0
  %1459 = vmatprep.subr.mxu0 0.0
  %1460 = vmatpush1.msra.mxu0 0.0
  %1461 = vmatprep.subr.mxu0 0.0
  %1462 = vmatpush1.msra.mxu0 0.0
  %1463 = vmatprep.subr.mxu0 0.0
  %1464 = vmatpush1.msra.mxu0 0.0
  %1465 = vmatprep.subr.mxu0 0.0
  %1466 = vmatpush1.msra.mxu0 0.0
  %1467 = vmatprep.subr.mxu0 0.0
  %1468 = vmatpush1.msra.mxu0 0.0
  %1469 = vmatprep.subr.mxu0 0.0
  %1470 = vmatpush1.msra.mxu0 0.0
  %1471 = vmatprep.subr.mxu0 0.0
  %1472 = vmatpush1.msra.mxu0 0.0
  %1473 = vmatprep.subr.mxu0 0.0
  %1474 = vmatpush1.msra.mxu0 0.0
  %1475 = vmatprep.mubr.f32.mxu0 0.0
  %1476 = vmatmul.mubr.f32.gmra.mrb[0].mxu0 %v1409
  %v1477 = vpop.f32.mrb[0].mxu0
  %v1478 = vadd.f32 %v1403, %v1477
  %v1479 = vpop.f32.mrb[0].mxu0
  %1480 = vdwg.mxu0
  %v1481 = vadd.f32 %v1478, %v383
  %v1482 = vxor.u32 %v1481, 2147483648
  %v1483 = vmul.f32 %v1482, 1.442695
  %v1484 = vpow.pop %v1483
  %v1485 = vadd.f32 %v1484, 1.0
  %v1486 = vrcp.pop %v1485
  %v1487 = vmul.f32 1.0, %v1486
  %v1488 = vmul.f32 %v1487, 2.0
  %v1489 = vsub.f32 %v1488, 1.0
  %v1490 = vmul.f32 %v1487, %v1226
  %1492 = vrot.lane.b32.xlu0 %v1489, 64
  %v1493 = vpop.permute.xlu0 %1492
  %v1495 = vmul.f32 %v1487, %v1493
  %1497 = vrot.lane.b32.xlu0 %v1495, 32
  %v1498 = vpop.permute.xlu0 %1497
  %v1500 = vadd.f32 %v1490, %v1498
  %v1501 = vtanh.pop %v1500
  %1503 = vrot.lane.b32.xlu0 %v1501, 64
  %v1504 = vpop.permute.xlu0 %1503
  %v1506 = vmul.f32 %v1487, %v1504
  %s1507 = scalar_lea.vmem [#allocation2], 40
  %v1508 = vld [vmem:[%s1507] sm:$0xff]
  %1509 = vmatprep.subr.mxu0 0.0
  %1510 = vmatpush1.msra.mxu0 %v34
  %1511 = vmatprep.subr.mxu0 0.0
  %1512 = vmatpush1.msra.mxu0 %v35
  %1513 = vmatprep.subr.mxu0 0.0
  %1514 = vmatpush1.msra.mxu0 %v36
  %1515 = vmatprep.subr.mxu0 0.0
  %1516 = vmatpush1.msra.mxu0 %v37
  %1517 = vmatprep.subr.mxu0 0.0
  %1518 = vmatpush1.msra.mxu0 0.0
  %1519 = vmatprep.subr.mxu0 0.0
  %1520 = vmatpush1.msra.mxu0 0.0
  %1521 = vmatprep.subr.mxu0 0.0
  %1522 = vmatpush1.msra.mxu0 0.0
  %1523 = vmatprep.subr.mxu0 0.0
  %1524 = vmatpush1.msra.mxu0 0.0
  %1525 = vmatprep.subr.mxu0 0.0
  %1526 = vmatpush1.msra.mxu0 0.0
  %1527 = vmatprep.subr.mxu0 0.0
  %1528 = vmatpush1.msra.mxu0 0.0
  %1529 = vmatprep.subr.mxu0 0.0
  %1530 = vmatpush1.msra.mxu0 0.0
  %1531 = vmatprep.subr.mxu0 0.0
  %1532 = vmatpush1.msra.mxu0 0.0
  %1533 = vmatprep.subr.mxu0 0.0
  %1534 = vmatpush1.msra.mxu0 0.0
  %1535 = vmatprep.subr.mxu0 0.0
  %1536 = vmatpush1.msra.mxu0 0.0
  %1537 = vmatprep.subr.mxu0 0.0
  %1538 = vmatpush1.msra.mxu0 0.0
  %1539 = vmatprep.subr.mxu0 0.0
  %1540 = vmatpush1.msra.mxu0 0.0
  %1541 = vmatprep.subr.mxu0 0.0
  %1542 = vmatpush1.msra.mxu0 0.0
  %1543 = vmatprep.subr.mxu0 0.0
  %1544 = vmatpush1.msra.mxu0 0.0
  %1545 = vmatprep.subr.mxu0 0.0
  %1546 = vmatpush1.msra.mxu0 0.0
  %1547 = vmatprep.subr.mxu0 0.0
  %1548 = vmatpush1.msra.mxu0 0.0
  %1549 = vmatprep.subr.mxu0 0.0
  %1550 = vmatpush1.msra.mxu0 0.0
  %1551 = vmatprep.subr.mxu0 0.0
  %1552 = vmatpush1.msra.mxu0 0.0
  %1553 = vmatprep.subr.mxu0 0.0
  %1554 = vmatpush1.msra.mxu0 0.0
  %1555 = vmatprep.subr.mxu0 0.0
  %1556 = vmatpush1.msra.mxu0 0.0
  %1557 = vmatprep.subr.mxu0 0.0
  %1558 = vmatpush1.msra.mxu0 0.0
  %1559 = vmatprep.subr.mxu0 0.0
  %1560 = vmatpush1.msra.mxu0 0.0
  %1561 = vmatprep.subr.mxu0 0.0
  %1562 = vmatpush1.msra.mxu0 0.0
  %1563 = vmatprep.subr.mxu0 0.0
  %1564 = vmatpush1.msra.mxu0 0.0
  %1565 = vmatprep.subr.mxu0 0.0
  %1566 = vmatpush1.msra.mxu0 0.0
  %1567 = vmatprep.subr.mxu0 0.0
  %1568 = vmatpush1.msra.mxu0 0.0
  %1569 = vmatprep.subr.mxu0 0.0
  %1570 = vmatpush1.msra.mxu0 0.0
  %1571 = vmatprep.subr.mxu0 0.0
  %1572 = vmatpush1.msra.mxu0 0.0
  %1573 = vmatprep.mubr.f32.mxu0 0.0
  %1574 = vmatmul.mubr.f32.gmra.mrb[0].mxu0 %v1409
  %v1575 = vpop.f32.mrb[0].mxu0
  %v1576 = vadd.f32 0.0, %v1575
  %v1577 = vpop.f32.mrb[0].mxu0
  %1578 = vdwg.mxu0
  %v1579 = vadd.f32 %v1508, %v1576
  %v1580 = vxor.u32 %v1579, 2147483648
  %v1581 = vmul.f32 %v1580, 1.442695
  %v1582 = vpow.pop %v1581
  %v1583 = vadd.f32 %v1582, 1.0
  %v1584 = vrcp.pop %v1583
  %v1585 = vmul.f32 1.0, %v1584
  %v1586 = vmul.f32 %v1585, 2.0
  %v1587 = vsub.f32 %v1586, 1.0
  %v1588 = vmul.f32 %v1585, %v1324
  %1590 = vrot.lane.b32.xlu0 %v1587, 64
  %v1591 = vpop.permute.xlu0 %1590
  %v1593 = vmul.f32 %v1585, %v1591
  %1595 = vrot.lane.b32.xlu0 %v1593, 32
  %v1596 = vpop.permute.xlu0 %1595
  %v1598 = vadd.f32 %v1588, %v1596
  %v1599 = vtanh.pop %v1598
  %1601 = vrot.lane.b32.xlu0 %v1599, 64
  %v1602 = vpop.permute.xlu0 %1601
  %v1604 = vmul.f32 %v1585, %v1602
  %1606 = vrot.lane.b32.xlu0 %v1506, 32
  %v1607 = vpop.permute.xlu0 %1606
  %v1608 = vsel %vm134, %v1607, 0
  %1610 = vmatprep.subr.mxu0 0.0
  %1611 = vmatpush1.msra.mxu0 %v42
  %1612 = vmatprep.subr.mxu0 0.0
  %1613 = vmatpush1.msra.mxu0 %v43
  %1614 = vmatprep.subr.mxu0 0.0
  %1615 = vmatpush1.msra.mxu0 %v44
  %1616 = vmatprep.subr.mxu0 0.0
  %1617 = vmatpush1.msra.mxu0 %v45
  %1618 = vmatprep.subr.mxu0 0.0
  %1619 = vmatpush1.msra.mxu0 0.0
  %1620 = vmatprep.subr.mxu0 0.0
  %1621 = vmatpush1.msra.mxu0 0.0
  %1622 = vmatprep.subr.mxu0 0.0
  %1623 = vmatpush1.msra.mxu0 0.0
  %1624 = vmatprep.subr.mxu0 0.0
  %1625 = vmatpush1.msra.mxu0 0.0
  %1626 = vmatprep.subr.mxu0 0.0
  %1627 = vmatpush1.msra.mxu0 0.0
  %1628 = vmatprep.subr.mxu0 0.0
  %1629 = vmatpush1.msra.mxu0 0.0
  %1630 = vmatprep.subr.mxu0 0.0
  %1631 = vmatpush1.msra.mxu0 0.0
  %1632 = vmatprep.subr.mxu0 0.0
  %1633 = vmatpush1.msra.mxu0 0.0
  %1634 = vmatprep.subr.mxu0 0.0
  %1635 = vmatpush1.msra.mxu0 0.0
  %1636 = vmatprep.subr.mxu0 0.0
  %1637 = vmatpush1.msra.mxu0 0.0
  %1638 = vmatprep.subr.mxu0 0.0
  %1639 = vmatpush1.msra.mxu0 0.0
  %1640 = vmatprep.subr.mxu0 0.0
  %1641 = vmatpush1.msra.mxu0 0.0
  %1642 = vmatprep.subr.mxu0 0.0
  %1643 = vmatpush1.msra.mxu0 0.0
  %1644 = vmatprep.subr.mxu0 0.0
  %1645 = vmatpush1.msra.mxu0 0.0
  %1646 = vmatprep.subr.mxu0 0.0
  %1647 = vmatpush1.msra.mxu0 0.0
  %1648 = vmatprep.subr.mxu0 0.0
  %1649 = vmatpush1.msra.mxu0 0.0
  %1650 = vmatprep.subr.mxu0 0.0
  %1651 = vmatpush1.msra.mxu0 0.0
  %1652 = vmatprep.subr.mxu0 0.0
  %1653 = vmatpush1.msra.mxu0 0.0
  %1654 = vmatprep.subr.mxu0 0.0
  %1655 = vmatpush1.msra.mxu0 0.0
  %1656 = vmatprep.subr.mxu0 0.0
  %1657 = vmatpush1.msra.mxu0 0.0
  %1658 = vmatprep.subr.mxu0 0.0
  %1659 = vmatpush1.msra.mxu0 0.0
  %1660 = vmatprep.subr.mxu0 0.0
  %1661 = vmatpush1.msra.mxu0 0.0
  %1662 = vmatprep.subr.mxu0 0.0
  %1663 = vmatpush1.msra.mxu0 0.0
  %1664 = vmatprep.subr.mxu0 0.0
  %1665 = vmatpush1.msra.mxu0 0.0
  %1666 = vmatprep.subr.mxu0 0.0
  %1667 = vmatpush1.msra.mxu0 0.0
  %1668 = vmatprep.subr.mxu0 0.0
  %1669 = vmatpush1.msra.mxu0 0.0
  %1670 = vmatprep.subr.mxu0 0.0
  %1671 = vmatpush1.msra.mxu0 0.0
  %1672 = vmatprep.subr.mxu0 0.0
  %1673 = vmatpush1.msra.mxu0 0.0
  %1674 = vmatprep.mubr.f32.mxu0 0.0
  %1675 = vmatmul.mubr.f32.gmra.mrb[0].mxu0 %v1608
  %v1676 = vpop.f32.mrb[0].mxu0
  %v1677 = vadd.f32 0.0, %v1676
  %v1678 = vpop.f32.mrb[0].mxu0
  %1679 = vdwg.mxu0
  %1681 = vrot.lane.b32.xlu0 %v1604, 32
  %v1682 = vpop.permute.xlu0 %1681
  %v1683 = vsel %vm134, %v1682, 0
  %1685 = vmatprep.subr.mxu0 0.0
  %1686 = vmatpush1.msra.mxu0 %v38
  %1687 = vmatprep.subr.mxu0 0.0
  %1688 = vmatpush1.msra.mxu0 %v39
  %1689 = vmatprep.subr.mxu0 0.0
  %1690 = vmatpush1.msra.mxu0 %v40
  %1691 = vmatprep.subr.mxu0 0.0
  %1692 = vmatpush1.msra.mxu0 %v41
  %1693 = vmatprep.subr.mxu0 0.0
  %1694 = vmatpush1.msra.mxu0 0.0
  %1695 = vmatprep.subr.mxu0 0.0
  %1696 = vmatpush1.msra.mxu0 0.0
  %1697 = vmatprep.subr.mxu0 0.0
  %1698 = vmatpush1.msra.mxu0 0.0
  %1699 = vmatprep.subr.mxu0 0.0
  %1700 = vmatpush1.msra.mxu0 0.0
  %1701 = vmatprep.subr.mxu0 0.0
  %1702 = vmatpush1.msra.mxu0 0.0
  %1703 = vmatprep.subr.mxu0 0.0
  %1704 = vmatpush1.msra.mxu0 0.0
  %1705 = vmatprep.subr.mxu0 0.0
  %1706 = vmatpush1.msra.mxu0 0.0
  %1707 = vmatprep.subr.mxu0 0.0
  %1708 = vmatpush1.msra.mxu0 0.0
  %1709 = vmatprep.subr.mxu0 0.0
  %1710 = vmatpush1.msra.mxu0 0.0
  %1711 = vmatprep.subr.mxu0 0.0
  %1712 = vmatpush1.msra.mxu0 0.0
  %1713 = vmatprep.subr.mxu0 0.0
  %1714 = vmatpush1.msra.mxu0 0.0
  %1715 = vmatprep.subr.mxu0 0.0
  %1716 = vmatpush1.msra.mxu0 0.0
  %1717 = vmatprep.subr.mxu0 0.0
  %1718 = vmatpush1.msra.mxu0 0.0
  %1719 = vmatprep.subr.mxu0 0.0
  %1720 = vmatpush1.msra.mxu0 0.0
  %1721 = vmatprep.subr.mxu0 0.0
  %1722 = vmatpush1.msra.mxu0 0.0
  %1723 = vmatprep.subr.mxu0 0.0
  %1724 = vmatpush1.msra.mxu0 0.0
  %1725 = vmatprep.subr.mxu0 0.0
  %1726 = vmatpush1.msra.mxu0 0.0
  %1727 = vmatprep.subr.mxu0 0.0
  %1728 = vmatpush1.msra.mxu0 0.0
  %1729 = vmatprep.subr.mxu0 0.0
  %1730 = vmatpush1.msra.mxu0 0.0
  %1731 = vmatprep.subr.mxu0 0.0
  %1732 = vmatpush1.msra.mxu0 0.0
  %1733 = vmatprep.subr.mxu0 0.0
  %1734 = vmatpush1.msra.mxu0 0.0
  %1735 = vmatprep.subr.mxu0 0.0
  %1736 = vmatpush1.msra.mxu0 0.0
  %1737 = vmatprep.subr.mxu0 0.0
  %1738 = vmatpush1.msra.mxu0 0.0
  %1739 = vmatprep.subr.mxu0 0.0
  %1740 = vmatpush1.msra.mxu0 0.0
  %1741 = vmatprep.subr.mxu0 0.0
  %1742 = vmatpush1.msra.mxu0 0.0
  %1743 = vmatprep.subr.mxu0 0.0
  %1744 = vmatpush1.msra.mxu0 0.0
  %1745 = vmatprep.subr.mxu0 0.0
  %1746 = vmatpush1.msra.mxu0 0.0
  %1747 = vmatprep.subr.mxu0 0.0
  %1748 = vmatpush1.msra.mxu0 0.0
  %1749 = vmatprep.mubr.f32.mxu0 0.0
  %1750 = vmatmul.mubr.f32.gmra.mrb[0].mxu0 %v1683
  %v1751 = vpop.f32.mrb[0].mxu0
  %v1752 = vadd.f32 %v1677, %v1751
  %v1753 = vpop.f32.mrb[0].mxu0
  %1754 = vdwg.mxu0
  %v1755 = vadd.f32 %v1752, %v383
  %v1756 = vxor.u32 %v1755, 2147483648
  %v1757 = vmul.f32 %v1756, 1.442695
  %v1758 = vpow.pop %v1757
  %v1759 = vadd.f32 %v1758, 1.0
  %v1760 = vrcp.pop %v1759
  %v1761 = vmul.f32 1.0, %v1760
  %v1762 = vmul.f32 %v1761, 2.0
  %v1763 = vsub.f32 %v1762, 1.0
  %v1764 = vmul.f32 %v1761, %v1500
  %1766 = vrot.lane.b32.xlu0 %v1763, 64
  %v1767 = vpop.permute.xlu0 %1766
  %v1769 = vmul.f32 %v1761, %v1767
  %1771 = vrot.lane.b32.xlu0 %v1769, 32
  %v1772 = vpop.permute.xlu0 %1771
  %v1774 = vadd.f32 %v1764, %v1772
  %v1775 = vtanh.pop %v1774
  %1777 = vrot.lane.b32.xlu0 %v1775, 64
  %v1778 = vpop.permute.xlu0 %1777
  %v1780 = vmul.f32 %v1761, %v1778
  %s1781 = scalar_lea.vmem [#allocation2], 48
  %v1782 = vld [vmem:[%s1781] sm:$0xff]
  %1783 = vmatprep.subr.mxu0 0.0
  %1784 = vmatpush1.msra.mxu0 %v34
  %1785 = vmatprep.subr.mxu0 0.0
  %1786 = vmatpush1.msra.mxu0 %v35
  %1787 = vmatprep.subr.mxu0 0.0
  %1788 = vmatpush1.msra.mxu0 %v36
  %1789 = vmatprep.subr.mxu0 0.0
  %1790 = vmatpush1.msra.mxu0 %v37
  %1791 = vmatprep.subr.mxu0 0.0
  %1792 = vmatpush1.msra.mxu0 0.0
  %1793 = vmatprep.subr.mxu0 0.0
  %1794 = vmatpush1.msra.mxu0 0.0
  %1795 = vmatprep.subr.mxu0 0.0
  %1796 = vmatpush1.msra.mxu0 0.0
  %1797 = vmatprep.subr.mxu0 0.0
  %1798 = vmatpush1.msra.mxu0 0.0
  %1799 = vmatprep.subr.mxu0 0.0
  %1800 = vmatpush1.msra.mxu0 0.0
  %1801 = vmatprep.subr.mxu0 0.0
  %1802 = vmatpush1.msra.mxu0 0.0
  %1803 = vmatprep.subr.mxu0 0.0
  %1804 = vmatpush1.msra.mxu0 0.0
  %1805 = vmatprep.subr.mxu0 0.0
  %1806 = vmatpush1.msra.mxu0 0.0
  %1807 = vmatprep.subr.mxu0 0.0
  %1808 = vmatpush1.msra.mxu0 0.0
  %1809 = vmatprep.subr.mxu0 0.0
  %1810 = vmatpush1.msra.mxu0 0.0
  %1811 = vmatprep.subr.mxu0 0.0
  %1812 = vmatpush1.msra.mxu0 0.0
  %1813 = vmatprep.subr.mxu0 0.0
  %1814 = vmatpush1.msra.mxu0 0.0
  %1815 = vmatprep.subr.mxu0 0.0
  %1816 = vmatpush1.msra.mxu0 0.0
  %1817 = vmatprep.subr.mxu0 0.0
  %1818 = vmatpush1.msra.mxu0 0.0
  %1819 = vmatprep.subr.mxu0 0.0
  %1820 = vmatpush1.msra.mxu0 0.0
  %1821 = vmatprep.subr.mxu0 0.0
  %1822 = vmatpush1.msra.mxu0 0.0
  %1823 = vmatprep.subr.mxu0 0.0
  %1824 = vmatpush1.msra.mxu0 0.0
  %1825 = vmatprep.subr.mxu0 0.0
  %1826 = vmatpush1.msra.mxu0 0.0
  %1827 = vmatprep.subr.mxu0 0.0
  %1828 = vmatpush1.msra.mxu0 0.0
  %1829 = vmatprep.subr.mxu0 0.0
  %1830 = vmatpush1.msra.mxu0 0.0
  %1831 = vmatprep.subr.mxu0 0.0
  %1832 = vmatpush1.msra.mxu0 0.0
  %1833 = vmatprep.subr.mxu0 0.0
  %1834 = vmatpush1.msra.mxu0 0.0
  %1835 = vmatprep.subr.mxu0 0.0
  %1836 = vmatpush1.msra.mxu0 0.0
  %1837 = vmatprep.subr.mxu0 0.0
  %1838 = vmatpush1.msra.mxu0 0.0
  %1839 = vmatprep.subr.mxu0 0.0
  %1840 = vmatpush1.msra.mxu0 0.0
  %1841 = vmatprep.subr.mxu0 0.0
  %1842 = vmatpush1.msra.mxu0 0.0
  %1843 = vmatprep.subr.mxu0 0.0
  %1844 = vmatpush1.msra.mxu0 0.0
  %1845 = vmatprep.subr.mxu0 0.0
  %1846 = vmatpush1.msra.mxu0 0.0
  %1847 = vmatprep.mubr.f32.mxu0 0.0
  %1848 = vmatmul.mubr.f32.gmra.mrb[0].mxu0 %v1683
  %v1849 = vpop.f32.mrb[0].mxu0
  %v1850 = vadd.f32 0.0, %v1849
  %v1851 = vpop.f32.mrb[0].mxu0
  %1852 = vdwg.mxu0
  %v1853 = vadd.f32 %v1782, %v1850
  %v1854 = vxor.u32 %v1853, 2147483648
  %v1855 = vmul.f32 %v1854, 1.442695
  %v1856 = vpow.pop %v1855
  %v1857 = vadd.f32 %v1856, 1.0
  %v1858 = vrcp.pop %v1857
  %v1859 = vmul.f32 1.0, %v1858
  %v1860 = vmul.f32 %v1859, 2.0
  %v1861 = vsub.f32 %v1860, 1.0
  %v1862 = vmul.f32 %v1859, %v1598
  %1864 = vrot.lane.b32.xlu0 %v1861, 64
  %v1865 = vpop.permute.xlu0 %1864
  %v1867 = vmul.f32 %v1859, %v1865
  %1869 = vrot.lane.b32.xlu0 %v1867, 32
  %v1870 = vpop.permute.xlu0 %1869
  %v1872 = vadd.f32 %v1862, %v1870
  %v1873 = vtanh.pop %v1872
  %1875 = vrot.lane.b32.xlu0 %v1873, 64
  %v1876 = vpop.permute.xlu0 %1875
  %v1878 = vmul.f32 %v1859, %v1876
  %1880 = vrot.lane.b32.xlu0 %v1780, 32
  %v1881 = vpop.permute.xlu0 %1880
  %v1882 = vsel %vm134, %v1881, 0
  %1884 = vmatprep.subr.mxu0 0.0
  %1885 = vmatpush1.msra.mxu0 %v42
  %1886 = vmatprep.subr.mxu0 0.0
  %1887 = vmatpush1.msra.mxu0 %v43
  %1888 = vmatprep.subr.mxu0 0.0
  %1889 = vmatpush1.msra.mxu0 %v44
  %1890 = vmatprep.subr.mxu0 0.0
  %1891 = vmatpush1.msra.mxu0 %v45
  %1892 = vmatprep.subr.mxu0 0.0
  %1893 = vmatpush1.msra.mxu0 0.0
  %1894 = vmatprep.subr.mxu0 0.0
  %1895 = vmatpush1.msra.mxu0 0.0
  %1896 = vmatprep.subr.mxu0 0.0
  %1897 = vmatpush1.msra.mxu0 0.0
  %1898 = vmatprep.subr.mxu0 0.0
  %1899 = vmatpush1.msra.mxu0 0.0
  %1900 = vmatprep.subr.mxu0 0.0
  %1901 = vmatpush1.msra.mxu0 0.0
  %1902 = vmatprep.subr.mxu0 0.0
  %1903 = vmatpush1.msra.mxu0 0.0
  %1904 = vmatprep.subr.mxu0 0.0
  %1905 = vmatpush1.msra.mxu0 0.0
  %1906 = vmatprep.subr.mxu0 0.0
  %1907 = vmatpush1.msra.mxu0 0.0
  %1908 = vmatprep.subr.mxu0 0.0
  %1909 = vmatpush1.msra.mxu0 0.0
  %1910 = vmatprep.subr.mxu0 0.0
  %1911 = vmatpush1.msra.mxu0 0.0
  %1912 = vmatprep.subr.mxu0 0.0
  %1913 = vmatpush1.msra.mxu0 0.0
  %1914 = vmatprep.subr.mxu0 0.0
  %1915 = vmatpush1.msra.mxu0 0.0
  %1916 = vmatprep.subr.mxu0 0.0
  %1917 = vmatpush1.msra.mxu0 0.0
  %1918 = vmatprep.subr.mxu0 0.0
  %1919 = vmatpush1.msra.mxu0 0.0
  %1920 = vmatprep.subr.mxu0 0.0
  %1921 = vmatpush1.msra.mxu0 0.0
  %1922 = vmatprep.subr.mxu0 0.0
  %1923 = vmatpush1.msra.mxu0 0.0
  %1924 = vmatprep.subr.mxu0 0.0
  %1925 = vmatpush1.msra.mxu0 0.0
  %1926 = vmatprep.subr.mxu0 0.0
  %1927 = vmatpush1.msra.mxu0 0.0
  %1928 = vmatprep.subr.mxu0 0.0
  %1929 = vmatpush1.msra.mxu0 0.0
  %1930 = vmatprep.subr.mxu0 0.0
  %1931 = vmatpush1.msra.mxu0 0.0
  %1932 = vmatprep.subr.mxu0 0.0
  %1933 = vmatpush1.msra.mxu0 0.0
  %1934 = vmatprep.subr.mxu0 0.0
  %1935 = vmatpush1.msra.mxu0 0.0
  %1936 = vmatprep.subr.mxu0 0.0
  %1937 = vmatpush1.msra.mxu0 0.0
  %1938 = vmatprep.subr.mxu0 0.0
  %1939 = vmatpush1.msra.mxu0 0.0
  %1940 = vmatprep.subr.mxu0 0.0
  %1941 = vmatpush1.msra.mxu0 0.0
  %1942 = vmatprep.subr.mxu0 0.0
  %1943 = vmatpush1.msra.mxu0 0.0
  %1944 = vmatprep.subr.mxu0 0.0
  %1945 = vmatpush1.msra.mxu0 0.0
  %1946 = vmatprep.subr.mxu0 0.0
  %1947 = vmatpush1.msra.mxu0 0.0
  %1948 = vmatprep.mubr.f32.mxu0 0.0
  %1949 = vmatmul.mubr.f32.gmra.mrb[0].mxu0 %v1882
  %v1950 = vpop.f32.mrb[0].mxu0
  %v1951 = vadd.f32 0.0, %v1950
  %v1952 = vpop.f32.mrb[0].mxu0
  %1953 = vdwg.mxu0
  %1955 = vrot.lane.b32.xlu0 %v1878, 32
  %v1956 = vpop.permute.xlu0 %1955
  %v1957 = vsel %vm134, %v1956, 0
  %1959 = vmatprep.subr.mxu0 0.0
  %1960 = vmatpush1.msra.mxu0 %v38
  %1961 = vmatprep.subr.mxu0 0.0
  %1962 = vmatpush1.msra.mxu0 %v39
  %1963 = vmatprep.subr.mxu0 0.0
  %1964 = vmatpush1.msra.mxu0 %v40
  %1965 = vmatprep.subr.mxu0 0.0
  %1966 = vmatpush1.msra.mxu0 %v41
  %1967 = vmatprep.subr.mxu0 0.0
  %1968 = vmatpush1.msra.mxu0 0.0
  %1969 = vmatprep.subr.mxu0 0.0
  %1970 = vmatpush1.msra.mxu0 0.0
  %1971 = vmatprep.subr.mxu0 0.0
  %1972 = vmatpush1.msra.mxu0 0.0
  %1973 = vmatprep.subr.mxu0 0.0
  %1974 = vmatpush1.msra.mxu0 0.0
  %1975 = vmatprep.subr.mxu0 0.0
  %1976 = vmatpush1.msra.mxu0 0.0
  %1977 = vmatprep.subr.mxu0 0.0
  %1978 = vmatpush1.msra.mxu0 0.0
  %1979 = vmatprep.subr.mxu0 0.0
  %1980 = vmatpush1.msra.mxu0 0.0
  %1981 = vmatprep.subr.mxu0 0.0
  %1982 = vmatpush1.msra.mxu0 0.0
  %1983 = vmatprep.subr.mxu0 0.0
  %1984 = vmatpush1.msra.mxu0 0.0
  %1985 = vmatprep.subr.mxu0 0.0
  %1986 = vmatpush1.msra.mxu0 0.0
  %1987 = vmatprep.subr.mxu0 0.0
  %1988 = vmatpush1.msra.mxu0 0.0
  %1989 = vmatprep.subr.mxu0 0.0
  %1990 = vmatpush1.msra.mxu0 0.0
  %1991 = vmatprep.subr.mxu0 0.0
  %1992 = vmatpush1.msra.mxu0 0.0
  %1993 = vmatprep.subr.mxu0 0.0
  %1994 = vmatpush1.msra.mxu0 0.0
  %1995 = vmatprep.subr.mxu0 0.0
  %1996 = vmatpush1.msra.mxu0 0.0
  %1997 = vmatprep.subr.mxu0 0.0
  %1998 = vmatpush1.msra.mxu0 0.0
  %1999 = vmatprep.subr.mxu0 0.0
  %2000 = vmatpush1.msra.mxu0 0.0
  %2001 = vmatprep.subr.mxu0 0.0
  %2002 = vmatpush1.msra.mxu0 0.0
  %2003 = vmatprep.subr.mxu0 0.0
  %2004 = vmatpush1.msra.mxu0 0.0
  %2005 = vmatprep.subr.mxu0 0.0
  %2006 = vmatpush1.msra.mxu0 0.0
  %2007 = vmatprep.subr.mxu0 0.0
  %2008 = vmatpush1.msra.mxu0 0.0
  %2009 = vmatprep.subr.mxu0 0.0
  %2010 = vmatpush1.msra.mxu0 0.0
  %2011 = vmatprep.subr.mxu0 0.0
  %2012 = vmatpush1.msra.mxu0 0.0
  %2013 = vmatprep.subr.mxu0 0.0
  %2014 = vmatpush1.msra.mxu0 0.0
  %2015 = vmatprep.subr.mxu0 0.0
  %2016 = vmatpush1.msra.mxu0 0.0
  %2017 = vmatprep.subr.mxu0 0.0
  %2018 = vmatpush1.msra.mxu0 0.0
  %2019 = vmatprep.subr.mxu0 0.0
  %2020 = vmatpush1.msra.mxu0 0.0
  %2021 = vmatprep.subr.mxu0 0.0
  %2022 = vmatpush1.msra.mxu0 0.0
  %2023 = vmatprep.mubr.f32.mxu0 0.0
  %2024 = vmatmul.mubr.f32.gmra.mrb[0].mxu0 %v1957
  %v2025 = vpop.f32.mrb[0].mxu0
  %v2026 = vadd.f32 %v1951, %v2025
  %v2027 = vpop.f32.mrb[0].mxu0
  %2028 = vdwg.mxu0
  %v2029 = vadd.f32 %v2026, %v383
  %v2030 = vxor.u32 %v2029, 2147483648
  %v2031 = vmul.f32 %v2030, 1.442695
  %v2032 = vpow.pop %v2031
  %v2033 = vadd.f32 %v2032, 1.0
  %v2034 = vrcp.pop %v2033
  %v2035 = vmul.f32 1.0, %v2034
  %v2036 = vmul.f32 %v2035, 2.0
  %v2037 = vsub.f32 %v2036, 1.0
  %v2038 = vmul.f32 %v2035, %v1774
  %2040 = vrot.lane.b32.xlu0 %v2037, 64
  %v2041 = vpop.permute.xlu0 %2040
  %v2043 = vmul.f32 %v2035, %v2041
  %2045 = vrot.lane.b32.xlu0 %v2043, 32
  %v2046 = vpop.permute.xlu0 %2045
  %v2048 = vadd.f32 %v2038, %v2046
  %v2049 = vtanh.pop %v2048
  %2051 = vrot.lane.b32.xlu0 %v2049, 64
  %v2052 = vpop.permute.xlu0 %2051
  %v2054 = vmul.f32 %v2035, %v2052
  %s2055 = scalar_lea.vmem [#allocation2], 56
  %v2056 = vld [vmem:[%s2055] sm:$0xff]
  %2057 = vmatprep.subr.mxu0 0.0
  %2058 = vmatpush1.msra.mxu0 %v34
  %2059 = vmatprep.subr.mxu0 0.0
  %2060 = vmatpush1.msra.mxu0 %v35
  %2061 = vmatprep.subr.mxu0 0.0
  %2062 = vmatpush1.msra.mxu0 %v36
  %2063 = vmatprep.subr.mxu0 0.0
  %2064 = vmatpush1.msra.mxu0 %v37
  %2065 = vmatprep.subr.mxu0 0.0
  %2066 = vmatpush1.msra.mxu0 0.0
  %2067 = vmatprep.subr.mxu0 0.0
  %2068 = vmatpush1.msra.mxu0 0.0
  %2069 = vmatprep.subr.mxu0 0.0
  %2070 = vmatpush1.msra.mxu0 0.0
  %2071 = vmatprep.subr.mxu0 0.0
  %2072 = vmatpush1.msra.mxu0 0.0
  %2073 = vmatprep.subr.mxu0 0.0
  %2074 = vmatpush1.msra.mxu0 0.0
  %2075 = vmatprep.subr.mxu0 0.0
  %2076 = vmatpush1.msra.mxu0 0.0
  %2077 = vmatprep.subr.mxu0 0.0
  %2078 = vmatpush1.msra.mxu0 0.0
  %2079 = vmatprep.subr.mxu0 0.0
  %2080 = vmatpush1.msra.mxu0 0.0
  %2081 = vmatprep.subr.mxu0 0.0
  %2082 = vmatpush1.msra.mxu0 0.0
  %2083 = vmatprep.subr.mxu0 0.0
  %2084 = vmatpush1.msra.mxu0 0.0
  %2085 = vmatprep.subr.mxu0 0.0
  %2086 = vmatpush1.msra.mxu0 0.0
  %2087 = vmatprep.subr.mxu0 0.0
  %2088 = vmatpush1.msra.mxu0 0.0
  %2089 = vmatprep.subr.mxu0 0.0
  %2090 = vmatpush1.msra.mxu0 0.0
  %2091 = vmatprep.subr.mxu0 0.0
  %2092 = vmatpush1.msra.mxu0 0.0
  %2093 = vmatprep.subr.mxu0 0.0
  %2094 = vmatpush1.msra.mxu0 0.0
  %2095 = vmatprep.subr.mxu0 0.0
  %2096 = vmatpush1.msra.mxu0 0.0
  %2097 = vmatprep.subr.mxu0 0.0
  %2098 = vmatpush1.msra.mxu0 0.0
  %2099 = vmatprep.subr.mxu0 0.0
  %2100 = vmatpush1.msra.mxu0 0.0
  %2101 = vmatprep.subr.mxu0 0.0
  %2102 = vmatpush1.msra.mxu0 0.0
  %2103 = vmatprep.subr.mxu0 0.0
  %2104 = vmatpush1.msra.mxu0 0.0
  %2105 = vmatprep.subr.mxu0 0.0
  %2106 = vmatpush1.msra.mxu0 0.0
  %2107 = vmatprep.subr.mxu0 0.0
  %2108 = vmatpush1.msra.mxu0 0.0
  %2109 = vmatprep.subr.mxu0 0.0
  %2110 = vmatpush1.msra.mxu0 0.0
  %2111 = vmatprep.subr.mxu0 0.0
  %2112 = vmatpush1.msra.mxu0 0.0
  %2113 = vmatprep.subr.mxu0 0.0
  %2114 = vmatpush1.msra.mxu0 0.0
  %2115 = vmatprep.subr.mxu0 0.0
  %2116 = vmatpush1.msra.mxu0 0.0
  %2117 = vmatprep.subr.mxu0 0.0
  %2118 = vmatpush1.msra.mxu0 0.0
  %2119 = vmatprep.subr.mxu0 0.0
  %2120 = vmatpush1.msra.mxu0 0.0
  %2121 = vmatprep.mubr.f32.mxu0 0.0
  %2122 = vmatmul.mubr.f32.gmra.mrb[0].mxu0 %v1957
  %v2123 = vpop.f32.mrb[0].mxu0
  %v2124 = vadd.f32 0.0, %v2123
  %v2125 = vpop.f32.mrb[0].mxu0
  %2126 = vdwg.mxu0
  %v2127 = vadd.f32 %v2056, %v2124
  %v2128 = vxor.u32 %v2127, 2147483648
  %v2129 = vmul.f32 %v2128, 1.442695
  %v2130 = vpow.pop %v2129
  %v2131 = vadd.f32 %v2130, 1.0
  %v2132 = vrcp.pop %v2131
  %v2133 = vmul.f32 1.0, %v2132
  %v2134 = vmul.f32 %v2133, 2.0
  %v2135 = vsub.f32 %v2134, 1.0
  %v2136 = vmul.f32 %v2133, %v1872
  %2138 = vrot.lane.b32.xlu0 %v2135, 64
  %v2139 = vpop.permute.xlu0 %2138
  %v2141 = vmul.f32 %v2133, %v2139
  %2143 = vrot.lane.b32.xlu0 %v2141, 32
  %v2144 = vpop.permute.xlu0 %2143
  %v2146 = vadd.f32 %v2136, %v2144
  %v2147 = vtanh.pop %v2146
  %2149 = vrot.lane.b32.xlu0 %v2147, 64
  %v2150 = vpop.permute.xlu0 %2149
  %v2152 = vmul.f32 %v2133, %v2150
  %2154 = vrot.lane.b32.xlu0 %v2054, 32
  %v2155 = vpop.permute.xlu0 %2154
  %v2156 = vsel %vm134, %v2155, 0
  %2158 = vmatprep.subr.mxu0 0.0
  %2159 = vmatpush1.msra.mxu0 %v42
  %2160 = vmatprep.subr.mxu0 0.0
  %2161 = vmatpush1.msra.mxu0 %v43
  %2162 = vmatprep.subr.mxu0 0.0
  %2163 = vmatpush1.msra.mxu0 %v44
  %2164 = vmatprep.subr.mxu0 0.0
  %2165 = vmatpush1.msra.mxu0 %v45
  %2166 = vmatprep.subr.mxu0 0.0
  %2167 = vmatpush1.msra.mxu0 0.0
  %2168 = vmatprep.subr.mxu0 0.0
  %2169 = vmatpush1.msra.mxu0 0.0
  %2170 = vmatprep.subr.mxu0 0.0
  %2171 = vmatpush1.msra.mxu0 0.0
  %2172 = vmatprep.subr.mxu0 0.0
  %2173 = vmatpush1.msra.mxu0 0.0
  %2174 = vmatprep.subr.mxu0 0.0
  %2175 = vmatpush1.msra.mxu0 0.0
  %2176 = vmatprep.subr.mxu0 0.0
  %2177 = vmatpush1.msra.mxu0 0.0
  %2178 = vmatprep.subr.mxu0 0.0
  %2179 = vmatpush1.msra.mxu0 0.0
  %2180 = vmatprep.subr.mxu0 0.0
  %2181 = vmatpush1.msra.mxu0 0.0
  %2182 = vmatprep.subr.mxu0 0.0
  %2183 = vmatpush1.msra.mxu0 0.0
  %2184 = vmatprep.subr.mxu0 0.0
  %2185 = vmatpush1.msra.mxu0 0.0
  %2186 = vmatprep.subr.mxu0 0.0
  %2187 = vmatpush1.msra.mxu0 0.0
  %2188 = vmatprep.subr.mxu0 0.0
  %2189 = vmatpush1.msra.mxu0 0.0
  %2190 = vmatprep.subr.mxu0 0.0
  %2191 = vmatpush1.msra.mxu0 0.0
  %2192 = vmatprep.subr.mxu0 0.0
  %2193 = vmatpush1.msra.mxu0 0.0
  %2194 = vmatprep.subr.mxu0 0.0
  %2195 = vmatpush1.msra.mxu0 0.0
  %2196 = vmatprep.subr.mxu0 0.0
  %2197 = vmatpush1.msra.mxu0 0.0
  %2198 = vmatprep.subr.mxu0 0.0
  %2199 = vmatpush1.msra.mxu0 0.0
  %2200 = vmatprep.subr.mxu0 0.0
  %2201 = vmatpush1.msra.mxu0 0.0
  %2202 = vmatprep.subr.mxu0 0.0
  %2203 = vmatpush1.msra.mxu0 0.0
  %2204 = vmatprep.subr.mxu0 0.0
  %2205 = vmatpush1.msra.mxu0 0.0
  %2206 = vmatprep.subr.mxu0 0.0
  %2207 = vmatpush1.msra.mxu0 0.0
  %2208 = vmatprep.subr.mxu0 0.0
  %2209 = vmatpush1.msra.mxu0 0.0
  %2210 = vmatprep.subr.mxu0 0.0
  %2211 = vmatpush1.msra.mxu0 0.0
  %2212 = vmatprep.subr.mxu0 0.0
  %2213 = vmatpush1.msra.mxu0 0.0
  %2214 = vmatprep.subr.mxu0 0.0
  %2215 = vmatpush1.msra.mxu0 0.0
  %2216 = vmatprep.subr.mxu0 0.0
  %2217 = vmatpush1.msra.mxu0 0.0
  %2218 = vmatprep.subr.mxu0 0.0
  %2219 = vmatpush1.msra.mxu0 0.0
  %2220 = vmatprep.subr.mxu0 0.0
  %2221 = vmatpush1.msra.mxu0 0.0
  %2222 = vmatprep.mubr.f32.mxu0 0.0
  %2223 = vmatmul.mubr.f32.gmra.mrb[0].mxu0 %v2156
  %v2224 = vpop.f32.mrb[0].mxu0
  %v2225 = vadd.f32 0.0, %v2224
  %v2226 = vpop.f32.mrb[0].mxu0
  %2227 = vdwg.mxu0
  %2229 = vrot.lane.b32.xlu0 %v2152, 32
  %v2230 = vpop.permute.xlu0 %2229
  %v2231 = vsel %vm134, %v2230, 0
  %2233 = vmatprep.subr.mxu0 0.0
  %2234 = vmatpush1.msra.mxu0 %v38
  %2235 = vmatprep.subr.mxu0 0.0
  %2236 = vmatpush1.msra.mxu0 %v39
  %2237 = vmatprep.subr.mxu0 0.0
  %2238 = vmatpush1.msra.mxu0 %v40
  %2239 = vmatprep.subr.mxu0 0.0
  %2240 = vmatpush1.msra.mxu0 %v41
  %2241 = vmatprep.subr.mxu0 0.0
  %2242 = vmatpush1.msra.mxu0 0.0
  %2243 = vmatprep.subr.mxu0 0.0
  %2244 = vmatpush1.msra.mxu0 0.0
  %2245 = vmatprep.subr.mxu0 0.0
  %2246 = vmatpush1.msra.mxu0 0.0
  %2247 = vmatprep.subr.mxu0 0.0
  %2248 = vmatpush1.msra.mxu0 0.0
  %2249 = vmatprep.subr.mxu0 0.0
  %2250 = vmatpush1.msra.mxu0 0.0
  %2251 = vmatprep.subr.mxu0 0.0
  %2252 = vmatpush1.msra.mxu0 0.0
  %2253 = vmatprep.subr.mxu0 0.0
  %2254 = vmatpush1.msra.mxu0 0.0
  %2255 = vmatprep.subr.mxu0 0.0
  %2256 = vmatpush1.msra.mxu0 0.0
  %2257 = vmatprep.subr.mxu0 0.0
  %2258 = vmatpush1.msra.mxu0 0.0
  %2259 = vmatprep.subr.mxu0 0.0
  %2260 = vmatpush1.msra.mxu0 0.0
  %2261 = vmatprep.subr.mxu0 0.0
  %2262 = vmatpush1.msra.mxu0 0.0
  %2263 = vmatprep.subr.mxu0 0.0
  %2264 = vmatpush1.msra.mxu0 0.0
  %2265 = vmatprep.subr.mxu0 0.0
  %2266 = vmatpush1.msra.mxu0 0.0
  %2267 = vmatprep.subr.mxu0 0.0
  %2268 = vmatpush1.msra.mxu0 0.0
  %2269 = vmatprep.subr.mxu0 0.0
  %2270 = vmatpush1.msra.mxu0 0.0
  %2271 = vmatprep.subr.mxu0 0.0
  %2272 = vmatpush1.msra.mxu0 0.0
  %2273 = vmatprep.subr.mxu0 0.0
  %2274 = vmatpush1.msra.mxu0 0.0
  %2275 = vmatprep.subr.mxu0 0.0
  %2276 = vmatpush1.msra.mxu0 0.0
  %2277 = vmatprep.subr.mxu0 0.0
  %2278 = vmatpush1.msra.mxu0 0.0
  %2279 = vmatprep.subr.mxu0 0.0
  %2280 = vmatpush1.msra.mxu0 0.0
  %2281 = vmatprep.subr.mxu0 0.0
  %2282 = vmatpush1.msra.mxu0 0.0
  %2283 = vmatprep.subr.mxu0 0.0
  %2284 = vmatpush1.msra.mxu0 0.0
  %2285 = vmatprep.subr.mxu0 0.0
  %2286 = vmatpush1.msra.mxu0 0.0
  %2287 = vmatprep.subr.mxu0 0.0
  %2288 = vmatpush1.msra.mxu0 0.0
  %2289 = vmatprep.subr.mxu0 0.0
  %2290 = vmatpush1.msra.mxu0 0.0
  %2291 = vmatprep.subr.mxu0 0.0
  %2292 = vmatpush1.msra.mxu0 0.0
  %2293 = vmatprep.subr.mxu0 0.0
  %2294 = vmatpush1.msra.mxu0 0.0
  %2295 = vmatprep.subr.mxu0 0.0
  %2296 = vmatpush1.msra.mxu0 0.0
  %2297 = vmatprep.mubr.f32.mxu0 0.0
  %2298 = vmatmul.mubr.f32.gmra.mrb[0].mxu0 %v2231
  %v2299 = vpop.f32.mrb[0].mxu0
  %v2300 = vadd.f32 %v2225, %v2299
  %v2301 = vpop.f32.mrb[0].mxu0
  %2302 = vdwg.mxu0
  %v2303 = vadd.f32 %v2300, %v383
  %v2304 = vxor.u32 %v2303, 2147483648
  %v2305 = vmul.f32 %v2304, 1.442695
  %v2306 = vpow.pop %v2305
  %v2307 = vadd.f32 %v2306, 1.0
  %v2308 = vrcp.pop %v2307
  %v2309 = vmul.f32 1.0, %v2308
  %v2310 = vmul.f32 %v2309, 2.0
  %v2311 = vsub.f32 %v2310, 1.0
  %v2312 = vmul.f32 %v2309, %v2048
  %2314 = vrot.lane.b32.xlu0 %v2311, 64
  %v2315 = vpop.permute.xlu0 %2314
  %v2317 = vmul.f32 %v2309, %v2315
  %2319 = vrot.lane.b32.xlu0 %v2317, 32
  %v2320 = vpop.permute.xlu0 %2319
  %v2322 = vadd.f32 %v2312, %v2320
  %v2323 = vtanh.pop %v2322
  %2325 = vrot.lane.b32.xlu0 %v2323, 64
  %v2326 = vpop.permute.xlu0 %2325
  %v2328 = vmul.f32 %v2309, %v2326
  %v2329 = vld [vmem:[%s7] sm:$0x1]
  %v2331 = vlaneseq
  %v2332 = vshrl.u32 %v2331, 7
  %v2333 = vsub.s32 0, %v2332
  %v2334 = vrot.slane %v2329, %v2333
  %2335 = vrot.lane.b32.xlu0 %v2334, 96
  %v2336 = vpop.permute.xlu0 %2335
  %v2338 = vmul.f32 %v2328, %v2336
  %2340 = vrot.lane.b32.xlu0 %v2338, 32
  %v2341 = vpop.permute.xlu0 %2340
  %v2343 = vsel %vm134, %v2341, 0.0
  %2344 = vadd.xlane.f32.xlu0 %v2343
  %v2345 = vpop.xlane.xlu0 %2344
  %v2346 = vld [vmem:[#allocation3] sm:$0x1]
  %v2348 = vlaneseq
  %v2349 = vshrl.u32 %v2348, 7
  %v2350 = vsub.s32 0, %v2349
  %v2351 = vrot.slane %v2346, %v2350
  %v2353 = vadd.f32 %v2345, %v2351
  %vm2354 = vcmask 7168
  %2355 = vst.msk [vmem:[%s9] sm:$0xff] %vm2354, %v2353
  // Predicated region
  $region38: #{lstm_predictor_forward.1} parent=0 // pred_check
    _
  $region39: #{lstm_predictor_forward.1} parent=0 // pred_check_branch
    %2357 = sbr.rel (0) target = $region41
  $region40: #{lstm_predictor_forward.1} parent=0 // pred_region
    _
  $region41: #{lstm_predictor_forward.1} parent=0 // pred_fallthru
    _
  // Predicated region
  $region42: #{lstm_predictor_forward.1} parent=0 // pred_check
    _
  $region43: #{lstm_predictor_forward.1} parent=0 // pred_check_branch
    %2359 = sbr.rel (0) target = $region45
  $region44: #{lstm_predictor_forward.1} parent=0 // pred_region
    _
  $region45: #{lstm_predictor_forward.1} parent=0 // pred_fallthru
    _

</llo_original>
